<compile_context>
chip_gen: v6e
topology: v6e:2x2x1
jax: 0.10.0
libtpu: 0.0.40
codegen_flags: <defaults>
</compile_context>

<pallas_src>
import functools

import jax
import jax.numpy as jnp
from jax import lax
from jax.experimental import pallas as pl
from jax.experimental.pallas import tpu as pltpu


def _unitnorm_kernel(x_ref, o_ref, *, seg, seed):
    """One (tm, W) block.  Each 128-lane row packs g = W // seg logical rows of
    length `seg`; segmented reductions run on the MXU via a block-diagonal selector."""
    x = x_ref[...]                                        # (tm, W) f32
    tm, W = x.shape
    g = W // seg

    # Grid-position-derived values computed at the TOP LEVEL (never inside pl.when):
    # primitives inside a cond branch are not substituted by interpreters/lowering.
    pid = pl.program_id(0)
    noise_base = (pid * (tm * W) + seed).astype(jnp.uint32)

    nz = (x != 0.0).astype(jnp.float32)                   # exact per-element mask

    if g == 1:
        sel = None
        cnt = jnp.sum(nz, axis=-1, keepdims=True)         # (tm, 1) nonzero count / row
    else:
        # sel[i, j] = 1 iff lanes i and j belong to the same length-`seg` segment.
        # x @ sel = segmented lane-sum, already broadcast back across each segment.
        # seg divides 128 here, hence is a power of two -> use shifts (no int div).
        shift = seg.bit_length() - 1
        li = lax.broadcasted_iota(jnp.int32, (W, W), 0) >> shift
        lj = lax.broadcasted_iota(jnp.int32, (W, W), 1) >> shift
        sel = (li == lj).astype(jnp.float32)              # (W, W) block-diagonal
        # Counts are small integers -> exact in bf16; keep this matmul cheap.
        cnt = jnp.dot(nz.astype(jnp.bfloat16), sel.astype(jnp.bfloat16),
                      preferred_element_type=jnp.float32)  # (tm, W)

    def seg_sum_sq(v):
        v2 = v * v
        if g == 1:
            return jnp.sum(v2, axis=-1, keepdims=True)
        # Full-precision contraction so the normalization matches the f32 reference.
        return jnp.dot(v2, sel, precision=lax.Precision.HIGHEST,
                       preferred_element_type=jnp.float32)

    all_valid = jnp.min(cnt) > 0.0                        # scalar gate for this block

    @pl.when(all_valid)
    def _fast():
        # Common case: no all-zero logical row -> plain L2 normalization.
        o_ref[...] = x * lax.rsqrt(seg_sum_sq(x))

    @pl.when(jnp.logical_not(all_valid))
    def _slow():
        # Rare case: some logical row is all-zero -> replace it with ~N(0,1) noise.
        # jnp-only counter hash (murmur3-style finalizer) -> uniforms; Irwin-Hall
        # sum of 6 uniforms approximates a standard normal.
        # TODO(synk): exact Box-Muller normals would need in-kernel sin/cos.
        idx = (lax.broadcasted_iota(jnp.int32, (tm, W), 0) * W
               + lax.broadcasted_iota(jnp.int32, (tm, W), 1))
        c0 = idx.astype(jnp.uint32) + noise_base
        acc = jnp.zeros((tm, W), jnp.float32)
        for r in range(6):
            h = c0 + jnp.uint32((r * 0x9E3779B9) & 0xFFFFFFFF)
            h = (h ^ (h >> 16)) * jnp.uint32(0x7FEB352D)
            h = (h ^ (h >> 15)) * jnp.uint32(0x846CA68B)
            h = h ^ (h >> 16)
            # h >> 8 < 2**24 -> exact in int32 and float32.
            u = (h >> 8).astype(jnp.int32).astype(jnp.float32) * (1.0 / 16777216.0)
            acc = acc + u
        noise = (acc - 3.0) * 1.4142135623730951          # mean 0, variance 1
        v = jnp.where(cnt > 0.0, x, noise)
        o_ref[...] = v * lax.rsqrt(seg_sum_sq(v))


def emb_norm_unit(vectors, *, seed=0, max_block_rows=2048,
                  block_budget_bytes=1 << 20):
    """EmbNorm(hidden_size, function='unit') forward.  vectors: (N, H) float array."""
    vectors = jnp.asarray(vectors, jnp.float32)
    N, H = vectors.shape
    seed = int(seed) & 0x7FFFFFFF

    # Lane-dense packing: g logical rows per 128-lane physical row when H divides 128.
    g = 128 // H if (H < 128 and 128 % H == 0) else 1
    W = g * H

    n_phys = -(-N // g)                                   # physical rows needed
    per_row_bytes = W * 4
    tm_max = max(8, (min(max_block_rows, block_budget_bytes // per_row_bytes) // 8) * 8)
    nb = -(-n_phys // tm_max)                             # number of grid blocks
    tm = ((-(-n_phys // nb) + 7) // 8) * 8                # balanced tile height (mult of 8)
    n_phys_pad = nb * tm
    n_pad = n_phys_pad * g

    x = vectors
    if n_pad != N:
        # Pad with ones (not zeros) so padding stays "valid" and never forces the
        # noise path; the padded rows are sliced off below.
        x = jnp.pad(x, ((0, n_pad - N), (0, 0)), constant_values=1.0)
    x = x.reshape(n_phys_pad, W)                          # row-major repack (layout only)

    total = n_phys_pad * W
    cost = pl.CostEstimate(
        flops=int(total * (6 + (4 * W if g > 1 else 4))),
        transcendentals=int(total // H),
        bytes_accessed=int(2 * total * 4))

    out = pl.pallas_call(
        functools.partial(_unitnorm_kernel, seg=H, seed=seed),
        out_shape=jax.ShapeDtypeStruct((n_phys_pad, W), jnp.float32),
        grid=(nb,),
        in_specs=[pl.BlockSpec((tm, W), lambda i: (i, 0))],
        out_specs=pl.BlockSpec((tm, W), lambda i: (i, 0)),
        compiler_params=pltpu.CompilerParams(
            dimension_semantics=("parallel",),            # megacore sharding on v7x
            vmem_limit_bytes=32 * 1024 * 1024),           # explicit (v5e default = 16 MiB)
        cost_estimate=cost,
    )(x)

    return out.reshape(n_pad, H)[:N]


if __name__ == "__main__":
    key = jax.random.PRNGKey(0)
    N, H = 16, 32                                         # 16 node embeddings, hidden_size=32
    x = jax.random.normal(key, (N, H), dtype=jnp.float32)
    # A couple of all-zero rows to exercise the randn-replacement path.
    x = x.at[3].set(0.0)
    x = x.at[10].set(0.0)

    out = jax.block_until_ready(emb_norm_unit(x, seed=0))
    assert out.shape == (N, H)

    # Rows with at least one nonzero element must match the deterministic reference;
    # all-zero rows get random noise, so only their unit norm is checked.
    valid = jnp.any(x != 0.0, axis=1)
    ref = x / jnp.sqrt(jnp.sum(x * x, axis=1, keepdims=True))
    err = jnp.where(valid[:, None], jnp.abs(out - ref), 0.0)
    assert float(jnp.max(err)) < 5e-5, "mismatch vs reference on valid rows"

    norms = jnp.sqrt(jnp.sum(out * out, axis=1))
    assert bool(jnp.all(jnp.abs(norms - 1.0) < 1e-3)), "output rows are not unit-norm"

    print("KERNEL_OK")
</pallas_src>

<mosaic_0001>
module attributes {stable_mosaic.version = 11 : i64} {
  func.func @_unitnorm_kernel(%arg0: i32, %arg1: memref<8x128xf32, #tpu.memory_space<vmem>>, %arg2: memref<8x128xf32, #tpu.memory_space<vmem>>) attributes {dimension_semantics = [#tpu.dimension_semantics<parallel>], iteration_bounds = array<i64: 1>, scalar_prefetch = 0 : i64, scratch_operands = 0 : i64, tpu.core_type = #tpu.core_type<tc>, window_params = [{transform_indices = @transform_0, window_bounds = array<i64: 8, 128>}, {transform_indices = @transform_1, window_bounds = array<i64: 8, 128>}]} {
    %c0 = arith.constant 0 : index
    %c0_0 = arith.constant 0 : index
    %0 = vector.load %arg1[%c0, %c0_0] : memref<8x128xf32, #tpu.memory_space<vmem>>, vector<8x128xf32>
    %c1024_i32 = arith.constant 1024 : i32
    %1 = arith.muli %arg0, %c1024_i32 : i32
    %c0_i32 = arith.constant 0 : i32
    %2 = arith.addi %1, %c0_i32 : i32
    %cst = arith.constant 0.000000e+00 : f32
    %3 = vector.broadcast %cst : f32 to vector<8x128xf32>
    %4 = arith.cmpf one, %0, %3 : vector<8x128xf32>
    %5 = arith.extui %4 : vector<8x128xi1> to vector<8x128xi32>
    %6 = arith.sitofp %5 : vector<8x128xi32> to vector<8x128xf32>
    %7 = tpu.iota {dimensions = array<i32: 0>} : vector<128x128xi32>
    %c5_i32 = arith.constant 5 : i32
    %8 = vector.broadcast %c5_i32 : i32 to vector<128x128xi32>
    %9 = arith.shrsi %7, %8 : vector<128x128xi32>
    %10 = tpu.iota {dimensions = array<i32: 1>} : vector<128x128xi32>
    %c5_i32_1 = arith.constant 5 : i32
    %11 = vector.broadcast %c5_i32_1 : i32 to vector<128x128xi32>
    %12 = arith.shrsi %10, %11 : vector<128x128xi32>
    %13 = arith.cmpi eq, %9, %12 : vector<128x128xi32>
    %14 = arith.extui %13 : vector<128x128xi1> to vector<128x128xi32>
    %15 = arith.sitofp %14 : vector<128x128xi32> to vector<128x128xf32>
    %16 = arith.truncf %6 : vector<8x128xf32> to vector<8x128xbf16>
    %17 = arith.truncf %15 : vector<128x128xf32> to vector<128x128xbf16>
    %cst_2 = arith.constant dense<0.000000e+00> : vector<8x128xf32>
    %18 = tpu.matmul %16, %17, %cst_2 {dimension_numbers = #tpu.dot_dimension_numbers<[1], [0], [0], [1], [0, 0, 1, 1], [], []>} : vector<8x128xbf16>, vector<128x128xbf16>, vector<8x128xf32> -> vector<8x128xf32>
    %19 = vector.shape_cast %18 : vector<8x128xf32> to vector<1x8x128xf32>
    %cst_3 = arith.constant dense<0x7F800000> : vector<1xf32>
    %20 = vector.multi_reduction <minimumf>, %19, %cst_3 [1, 2] : vector<1x8x128xf32> to vector<1xf32>
    %21 = vector.shape_cast %20 : vector<1xf32> to vector<1x1x1xf32>
    %22 = vector.extract %21[0, 0, 0] : f32 from vector<1x1x1xf32>
    %cst_4 = arith.constant 0.000000e+00 : f32
    %23 = arith.cmpf ogt, %22, %cst_4 : f32
    %24 = arith.extui %23 : i1 to i32
    %c0_i32_5 = arith.constant 0 : i32
    %25 = arith.cmpi ne, %24, %c0_i32_5 : i32
    scf.if %25 {
      %29 = arith.mulf %0, %0 : vector<8x128xf32>
      %cst_7 = arith.constant dense<0.000000e+00> : vector<8x128xf32>
      %30 = tpu.matmul %29, %15, %cst_7 {dimension_numbers = #tpu.dot_dimension_numbers<[1], [0], [0], [1], [0, 0, 1, 1], [], []>, precision = #tpu.contract_precision<fp32>} : vector<8x128xf32>, vector<128x128xf32>, vector<8x128xf32> -> vector<8x128xf32>
      %31 = math.rsqrt %30 : vector<8x128xf32>
      %32 = arith.mulf %0, %31 : vector<8x128xf32>
      %c0_8 = arith.constant 0 : index
      %c0_9 = arith.constant 0 : index
      %33 = vector.load %arg2[%c0_8, %c0_9] : memref<8x128xf32, #tpu.memory_space<vmem>>, vector<8x128xf32>
      tpu.vector_store %arg2[%c0_8, %c0_9], %32 {strides = array<i32>} : memref<8x128xf32, #tpu.memory_space<vmem>>, vector<8x128xf32>,
    } else {
    }
    %true = arith.constant true
    %26 = arith.xori %23, %true : i1
    %27 = arith.extui %26 : i1 to i32
    %c0_i32_6 = arith.constant 0 : i32
    %28 = arith.cmpi ne, %27, %c0_i32_6 : i32
    scf.if %28 {
      %29 = tpu.iota {dimensions = array<i32: 0>} : vector<8x128xi32>
      %c128_i32 = arith.constant 128 : i32
      %30 = vector.broadcast %c128_i32 : i32 to vector<8x128xi32>
      %31 = arith.muli %29, %30 : vector<8x128xi32>
      %32 = tpu.iota {dimensions = array<i32: 1>} : vector<8x128xi32>
      %33 = arith.addi %31, %32 : vector<8x128xi32>
      %34 = vector.broadcast %2 : i32 to vector<8x128xi32>
      %35 = arith.addi %33, %34 : vector<8x128xi32>
      %cst_7 = arith.constant 0.000000e+00 : f32
      %36 = vector.broadcast %cst_7 : f32 to vector<8x128xf32>
      %c0_i32_8 = arith.constant 0 : i32
      %37 = vector.broadcast %c0_i32_8 : i32 to vector<8x128xi32>
      %38 = arith.addi %35, %37 : vector<8x128xi32>
      %c16_i32 = arith.constant 16 : i32
      %39 = vector.broadcast %c16_i32 : i32 to vector<8x128xi32>
      %40 = arith.shrui %38, %39 : vector<8x128xi32>
      %41 = arith.xori %38, %40 : vector<8x128xi32>
      %c2146121005_i32 = arith.constant 2146121005 : i32
      %42 = vector.broadcast %c2146121005_i32 : i32 to vector<8x128xi32>
      %43 = arith.muli %41, %42 : vector<8x128xi32>
      %c15_i32 = arith.constant 15 : i32
      %44 = vector.broadcast %c15_i32 : i32 to vector<8x128xi32>
      %45 = arith.shrui %43, %44 : vector<8x128xi32>
      %46 = arith.xori %43, %45 : vector<8x128xi32>
      %c-2073254261_i32 = arith.constant -2073254261 : i32
      %47 = vector.broadcast %c-2073254261_i32 : i32 to vector<8x128xi32>
      %48 = arith.muli %46, %47 : vector<8x128xi32>
      %c16_i32_9 = arith.constant 16 : i32
      %49 = vector.broadcast %c16_i32_9 : i32 to vector<8x128xi32>
      %50 = arith.shrui %48, %49 : vector<8x128xi32>
      %51 = arith.xori %48, %50 : vector<8x128xi32>
      %c8_i32 = arith.constant 8 : i32
      %52 = vector.broadcast %c8_i32 : i32 to vector<8x128xi32>
      %53 = arith.shrui %51, %52 : vector<8x128xi32>
      %54 = arith.sitofp %53 : vector<8x128xi32> to vector<8x128xf32>
      %cst_10 = arith.constant 5.96046448E-8 : f32
      %55 = vector.broadcast %cst_10 : f32 to vector<8x128xf32>
      %56 = arith.mulf %54, %55 : vector<8x128xf32>
      %57 = arith.addf %36, %56 : vector<8x128xf32>
      %c-1640531527_i32 = arith.constant -1640531527 : i32
      %58 = vector.broadcast %c-1640531527_i32 : i32 to vector<8x128xi32>
      %59 = arith.addi %35, %58 : vector<8x128xi32>
      %c16_i32_11 = arith.constant 16 : i32
      %60 = vector.broadcast %c16_i32_11 : i32 to vector<8x128xi32>
      %61 = arith.shrui %59, %60 : vector<8x128xi32>
      %62 = arith.xori %59, %61 : vector<8x128xi32>
      %c2146121005_i32_12 = arith.constant 2146121005 : i32
      %63 = vector.broadcast %c2146121005_i32_12 : i32 to vector<8x128xi32>
      %64 = arith.muli %62, %63 : vector<8x128xi32>
      %c15_i32_13 = arith.constant 15 : i32
      %65 = vector.broadcast %c15_i32_13 : i32 to vector<8x128xi32>
      %66 = arith.shrui %64, %65 : vector<8x128xi32>
      %67 = arith.xori %64, %66 : vector<8x128xi32>
      %c-2073254261_i32_14 = arith.constant -2073254261 : i32
      %68 = vector.broadcast %c-2073254261_i32_14 : i32 to vector<8x128xi32>
      %69 = arith.muli %67, %68 : vector<8x128xi32>
      %c16_i32_15 = arith.constant 16 : i32
      %70 = vector.broadcast %c16_i32_15 : i32 to vector<8x128xi32>
      %71 = arith.shrui %69, %70 : vector<8x128xi32>
      %72 = arith.xori %69, %71 : vector<8x128xi32>
      %c8_i32_16 = arith.constant 8 : i32
      %73 = vector.broadcast %c8_i32_16 : i32 to vector<8x128xi32>
      %74 = arith.shrui %72, %73 : vector<8x128xi32>
      %75 = arith.sitofp %74 : vector<8x128xi32> to vector<8x128xf32>
      %cst_17 = arith.constant 5.96046448E-8 : f32
      %76 = vector.broadcast %cst_17 : f32 to vector<8x128xf32>
      %77 = arith.mulf %75, %76 : vector<8x128xf32>
      %78 = arith.addf %57, %77 : vector<8x128xf32>
      %c1013904242_i32 = arith.constant 1013904242 : i32
      %79 = vector.broadcast %c1013904242_i32 : i32 to vector<8x128xi32>
      %80 = arith.addi %35, %79 : vector<8x128xi32>
      %c16_i32_18 = arith.constant 16 : i32
      %81 = vector.broadcast %c16_i32_18 : i32 to vector<8x128xi32>
      %82 = arith.shrui %80, %81 : vector<8x128xi32>
      %83 = arith.xori %80, %82 : vector<8x128xi32>
      %c2146121005_i32_19 = arith.constant 2146121005 : i32
      %84 = vector.broadcast %c2146121005_i32_19 : i32 to vector<8x128xi32>
      %85 = arith.muli %83, %84 : vector<8x128xi32>
      %c15_i32_20 = arith.constant 15 : i32
      %86 = vector.broadcast %c15_i32_20 : i32 to vector<8x128xi32>
      %87 = arith.shrui %85, %86 : vector<8x128xi32>
      %88 = arith.xori %85, %87 : vector<8x128xi32>
      %c-2073254261_i32_21 = arith.constant -2073254261 : i32
      %89 = vector.broadcast %c-2073254261_i32_21 : i32 to vector<8x128xi32>
      %90 = arith.muli %88, %89 : vector<8x128xi32>
      %c16_i32_22 = arith.constant 16 : i32
      %91 = vector.broadcast %c16_i32_22 : i32 to vector<8x128xi32>
      %92 = arith.shrui %90, %91 : vector<8x128xi32>
      %93 = arith.xori %90, %92 : vector<8x128xi32>
      %c8_i32_23 = arith.constant 8 : i32
      %94 = vector.broadcast %c8_i32_23 : i32 to vector<8x128xi32>
      %95 = arith.shrui %93, %94 : vector<8x128xi32>
      %96 = arith.sitofp %95 : vector<8x128xi32> to vector<8x128xf32>
      %cst_24 = arith.constant 5.96046448E-8 : f32
      %97 = vector.broadcast %cst_24 : f32 to vector<8x128xf32>
      %98 = arith.mulf %96, %97 : vector<8x128xf32>
      %99 = arith.addf %78, %98 : vector<8x128xf32>
      %c-626627285_i32 = arith.constant -626627285 : i32
      %100 = vector.broadcast %c-626627285_i32 : i32 to vector<8x128xi32>
      %101 = arith.addi %35, %100 : vector<8x128xi32>
      %c16_i32_25 = arith.constant 16 : i32
      %102 = vector.broadcast %c16_i32_25 : i32 to vector<8x128xi32>
      %103 = arith.shrui %101, %102 : vector<8x128xi32>
      %104 = arith.xori %101, %103 : vector<8x128xi32>
      %c2146121005_i32_26 = arith.constant 2146121005 : i32
      %105 = vector.broadcast %c2146121005_i32_26 : i32 to vector<8x128xi32>
      %106 = arith.muli %104, %105 : vector<8x128xi32>
      %c15_i32_27 = arith.constant 15 : i32
      %107 = vector.broadcast %c15_i32_27 : i32 to vector<8x128xi32>
      %108 = arith.shrui %106, %107 : vector<8x128xi32>
      %109 = arith.xori %106, %108 : vector<8x128xi32>
      %c-2073254261_i32_28 = arith.constant -2073254261 : i32
      %110 = vector.broadcast %c-2073254261_i32_28 : i32 to vector<8x128xi32>
      %111 = arith.muli %109, %110 : vector<8x128xi32>
      %c16_i32_29 = arith.constant 16 : i32
      %112 = vector.broadcast %c16_i32_29 : i32 to vector<8x128xi32>
      %113 = arith.shrui %111, %112 : vector<8x128xi32>
      %114 = arith.xori %111, %113 : vector<8x128xi32>
      %c8_i32_30 = arith.constant 8 : i32
      %115 = vector.broadcast %c8_i32_30 : i32 to vector<8x128xi32>
      %116 = arith.shrui %114, %115 : vector<8x128xi32>
      %117 = arith.sitofp %116 : vector<8x128xi32> to vector<8x128xf32>
      %cst_31 = arith.constant 5.96046448E-8 : f32
      %118 = vector.broadcast %cst_31 : f32 to vector<8x128xf32>
      %119 = arith.mulf %117, %118 : vector<8x128xf32>
      %120 = arith.addf %99, %119 : vector<8x128xf32>
      %c2027808484_i32 = arith.constant 2027808484 : i32
      %121 = vector.broadcast %c2027808484_i32 : i32 to vector<8x128xi32>
      %122 = arith.addi %35, %121 : vector<8x128xi32>
      %c16_i32_32 = arith.constant 16 : i32
      %123 = vector.broadcast %c16_i32_32 : i32 to vector<8x128xi32>
      %124 = arith.shrui %122, %123 : vector<8x128xi32>
      %125 = arith.xori %122, %124 : vector<8x128xi32>
      %c2146121005_i32_33 = arith.constant 2146121005 : i32
      %126 = vector.broadcast %c2146121005_i32_33 : i32 to vector<8x128xi32>
      %127 = arith.muli %125, %126 : vector<8x128xi32>
      %c15_i32_34 = arith.constant 15 : i32
      %128 = vector.broadcast %c15_i32_34 : i32 to vector<8x128xi32>
      %129 = arith.shrui %127, %128 : vector<8x128xi32>
      %130 = arith.xori %127, %129 : vector<8x128xi32>
      %c-2073254261_i32_35 = arith.constant -2073254261 : i32
      %131 = vector.broadcast %c-2073254261_i32_35 : i32 to vector<8x128xi32>
      %132 = arith.muli %130, %131 : vector<8x128xi32>
      %c16_i32_36 = arith.constant 16 : i32
      %133 = vector.broadcast %c16_i32_36 : i32 to vector<8x128xi32>
      %134 = arith.shrui %132, %133 : vector<8x128xi32>
      %135 = arith.xori %132, %134 : vector<8x128xi32>
      %c8_i32_37 = arith.constant 8 : i32
      %136 = vector.broadcast %c8_i32_37 : i32 to vector<8x128xi32>
      %137 = arith.shrui %135, %136 : vector<8x128xi32>
      %138 = arith.sitofp %137 : vector<8x128xi32> to vector<8x128xf32>
      %cst_38 = arith.constant 5.96046448E-8 : f32
      %139 = vector.broadcast %cst_38 : f32 to vector<8x128xf32>
      %140 = arith.mulf %138, %139 : vector<8x128xf32>
      %141 = arith.addf %120, %140 : vector<8x128xf32>
      %c387276957_i32 = arith.constant 387276957 : i32
      %142 = vector.broadcast %c387276957_i32 : i32 to vector<8x128xi32>
      %143 = arith.addi %35, %142 : vector<8x128xi32>
      %c16_i32_39 = arith.constant 16 : i32
      %144 = vector.broadcast %c16_i32_39 : i32 to vector<8x128xi32>
      %145 = arith.shrui %143, %144 : vector<8x128xi32>
      %146 = arith.xori %143, %145 : vector<8x128xi32>
      %c2146121005_i32_40 = arith.constant 2146121005 : i32
      %147 = vector.broadcast %c2146121005_i32_40 : i32 to vector<8x128xi32>
      %148 = arith.muli %146, %147 : vector<8x128xi32>
      %c15_i32_41 = arith.constant 15 : i32
      %149 = vector.broadcast %c15_i32_41 : i32 to vector<8x128xi32>
      %150 = arith.shrui %148, %149 : vector<8x128xi32>
      %151 = arith.xori %148, %150 : vector<8x128xi32>
      %c-2073254261_i32_42 = arith.constant -2073254261 : i32
      %152 = vector.broadcast %c-2073254261_i32_42 : i32 to vector<8x128xi32>
      %153 = arith.muli %151, %152 : vector<8x128xi32>
      %c16_i32_43 = arith.constant 16 : i32
      %154 = vector.broadcast %c16_i32_43 : i32 to vector<8x128xi32>
      %155 = arith.shrui %153, %154 : vector<8x128xi32>
      %156 = arith.xori %153, %155 : vector<8x128xi32>
      %c8_i32_44 = arith.constant 8 : i32
      %157 = vector.broadcast %c8_i32_44 : i32 to vector<8x128xi32>
      %158 = arith.shrui %156, %157 : vector<8x128xi32>
      %159 = arith.sitofp %158 : vector<8x128xi32> to vector<8x128xf32>
      %cst_45 = arith.constant 5.96046448E-8 : f32
      %160 = vector.broadcast %cst_45 : f32 to vector<8x128xf32>
      %161 = arith.mulf %159, %160 : vector<8x128xf32>
      %162 = arith.addf %141, %161 : vector<8x128xf32>
      %cst_46 = arith.constant 3.000000e+00 : f32
      %163 = vector.broadcast %cst_46 : f32 to vector<8x128xf32>
      %164 = arith.subf %162, %163 : vector<8x128xf32>
      %cst_47 = arith.constant 1.41421354 : f32
      %165 = vector.broadcast %cst_47 : f32 to vector<8x128xf32>
      %166 = arith.mulf %164, %165 : vector<8x128xf32>
      %cst_48 = arith.constant 0.000000e+00 : f32
      %167 = vector.broadcast %cst_48 : f32 to vector<8x128xf32>
      %168 = arith.cmpf ogt, %18, %167 : vector<8x128xf32>
      %169 = arith.select %168, %0, %166 : vector<8x128xi1>, vector<8x128xf32>
      %170 = arith.mulf %169, %169 : vector<8x128xf32>
      %cst_49 = arith.constant dense<0.000000e+00> : vector<8x128xf32>
      %171 = tpu.matmul %170, %15, %cst_49 {dimension_numbers = #tpu.dot_dimension_numbers<[1], [0], [0], [1], [0, 0, 1, 1], [], []>, precision = #tpu.contract_precision<fp32>} : vector<8x128xf32>, vector<128x128xf32>, vector<8x128xf32> -> vector<8x128xf32>
      %172 = math.rsqrt %171 : vector<8x128xf32>
      %173 = arith.mulf %169, %172 : vector<8x128xf32>
      %c0_50 = arith.constant 0 : index
      %c0_51 = arith.constant 0 : index
      %174 = vector.load %arg2[%c0_50, %c0_51] : memref<8x128xf32, #tpu.memory_space<vmem>>, vector<8x128xf32>
      tpu.vector_store %arg2[%c0_50, %c0_51], %173 {strides = array<i32>} : memref<8x128xf32, #tpu.memory_space<vmem>>, vector<8x128xf32>,
    } else {
    }
    return
  }
  func.func @transform_0(%arg0: i32) -> (i32, i32) {
    %c0_i32 = arith.constant 0 : i32
    %c0_i32_0 = arith.constant 0 : i32
    return %arg0, %c0_i32 : i32, i32
  }
  func.func @transform_1(%arg0: i32) -> (i32, i32) {
    %c0_i32 = arith.constant 0 : i32
    %c0_i32_0 = arith.constant 0 : i32
    return %arg0, %c0_i32 : i32, i32
  }
}

</mosaic_0001>

<llo_original>
// kernel: tpu_custom_call.1
$region0: #{tpu_custom_call.1}
  #allocation0 [shape = 'u32[]', space=smem, size = 0x4, offset = 0x4, fixed_abs, tag = 'smem constant byte address 0x4 - core index']
  #allocation1 [shape = 'u32[144,128]{1,0:T(1,128)}', space=vmem, size = 0x12000, scoped, tag = 'internal scratch']
  %s0 = inlined_call_operand.hbm [shape: f32[8,128], index: 0, kind: input, shape index: {}]
  %s1 = inlined_call_operand.hbm [shape: f32[8,128], index: 1, kind: output, shape index: {}]
  %s2 = sld [smem:[#allocation0]]
  $region26: #{tpu_custom_call.1} parent=0
    _
  %s4 = ssub.s32 1, %s2
  %s5 = scalar_select 0, %s4, %s2
  $region1: #{tpu_custom_call.1} parent=0
    #allocation2 [shape = 'u8[4096]{0}', space=vmem, size = 0x1000, scoped, tag = 'input window, operand 0, single buffered']
    #allocation3 [shape = 's32[1]{0}', space=sflag, size = 0x4, scoped, tag = 'scoped memory for tpu_custom_call.1']
    #allocation4 [shape = 's32[1]{0}', space=sflag, size = 0x4, scoped, tag = 'scoped memory for tpu_custom_call.1']
    #allocation5 [shape = 'u8[4096]{0}', space=vmem, size = 0x1000, scoped, tag = 'output window, operand 0, single buffered']
    %6 = vsyncpa [#allocation3], 0
    %7 = vsyncpa [#allocation4], 0
    // Predicated region
    $region2: #{tpu_custom_call.1} parent=1 // pred_check
      _
    $region3: #{tpu_custom_call.1} parent=1 // pred_check_branch
      %9 = sbr.rel (0) target = $region5
    $region4: #{tpu_custom_call.1} parent=1 // pred_region
      %s11 = ssub.s32 128, 128
      %12 = vsyncadd [#allocation3], %s11
      %s14 = sshll.u32 [#allocation2], 4
      %s15 = int_to_ptr.vmem [resolvable:$true] %s14
      %17 = dma.hbm_to_vmem [thread:$0]  %s0, 128, %s15, [#allocation3]
    $region5: #{tpu_custom_call.1} parent=1 // pred_fallthru
      _
    // Predicated region
    $region6: #{tpu_custom_call.1} parent=1 // pred_check
      _
    $region7: #{tpu_custom_call.1} parent=1 // pred_check_branch
      %19 = sbr.rel (0) target = $region9
    $region8: #{tpu_custom_call.1} parent=1 // pred_region
      %20 = dma.done [#allocation3], 128
    $region9: #{tpu_custom_call.1} parent=1 // pred_fallthru
      _
    %v22 = vld [vmem:[#allocation2] sm:$0xff]
    %s23 = smul.u32 0, 1024
    %vm24 = vcmp.ne.f32.partialorder %v22, 0.0
    %v25 = vlaneseq
    %v26 = vshrl.u32 %v25, 7
    %v27 = vadd.s32 %v26, 8
    %v28 = vadd.s32 %v26, 16
    %v29 = vadd.s32 %v26, 24
    %v30 = vadd.s32 %v26, 32
    %v31 = vadd.s32 %v26, 40
    %v32 = vadd.s32 %v26, 48
    %v33 = vadd.s32 %v26, 56
    %v34 = vadd.s32 %v26, 64
    %v35 = vadd.s32 %v26, 72
    %v36 = vadd.s32 %v26, 80
    %v37 = vadd.s32 %v26, 88
    %v38 = vadd.s32 %v26, 96
    %v39 = vadd.s32 %v26, 104
    %v40 = vadd.s32 %v26, 112
    %v41 = vadd.s32 %v26, 120
    %v42 = vshra.s32 %v26, 5
    %v43 = vshra.s32 %v27, 5
    %v44 = vshra.s32 %v28, 5
    %v45 = vshra.s32 %v29, 5
    %v46 = vshra.s32 %v30, 5
    %v47 = vshra.s32 %v31, 5
    %v48 = vshra.s32 %v32, 5
    %v49 = vshra.s32 %v33, 5
    %v50 = vshra.s32 %v34, 5
    %v51 = vshra.s32 %v35, 5
    %v52 = vshra.s32 %v36, 5
    %v53 = vshra.s32 %v37, 5
    %v54 = vshra.s32 %v38, 5
    %v55 = vshra.s32 %v39, 5
    %v56 = vshra.s32 %v40, 5
    %v57 = vshra.s32 %v41, 5
    %v58 = vlaneseq
    %v59 = vand.u32 %v58, 127
    %v60 = vshra.s32 %v59, 5
    %vm61 = vcmp.eq.s32.totalorder %v42, %v60
    %vm62 = vcmp.eq.s32.totalorder %v43, %v60
    %vm63 = vcmp.eq.s32.totalorder %v44, %v60
    %vm64 = vcmp.eq.s32.totalorder %v45, %v60
    %vm65 = vcmp.eq.s32.totalorder %v46, %v60
    %vm66 = vcmp.eq.s32.totalorder %v47, %v60
    %vm67 = vcmp.eq.s32.totalorder %v48, %v60
    %vm68 = vcmp.eq.s32.totalorder %v49, %v60
    %vm69 = vcmp.eq.s32.totalorder %v50, %v60
    %vm70 = vcmp.eq.s32.totalorder %v51, %v60
    %vm71 = vcmp.eq.s32.totalorder %v52, %v60
    %vm72 = vcmp.eq.s32.totalorder %v53, %v60
    %vm73 = vcmp.eq.s32.totalorder %v54, %v60
    %vm74 = vcmp.eq.s32.totalorder %v55, %v60
    %vm75 = vcmp.eq.s32.totalorder %v56, %v60
    %vm76 = vcmp.eq.s32.totalorder %v57, %v60
    %v77 = vsel %vm61, 1, 0
    %v78 = vsel %vm62, 1, 0
    %v79 = vsel %vm63, 1, 0
    %v80 = vsel %vm64, 1, 0
    %v81 = vsel %vm65, 1, 0
    %v82 = vsel %vm66, 1, 0
    %v83 = vsel %vm67, 1, 0
    %v84 = vsel %vm68, 1, 0
    %v85 = vsel %vm69, 1, 0
    %v86 = vsel %vm70, 1, 0
    %v87 = vsel %vm71, 1, 0
    %v88 = vsel %vm72, 1, 0
    %v89 = vsel %vm73, 1, 0
    %v90 = vsel %vm74, 1, 0
    %v91 = vsel %vm75, 1, 0
    %v92 = vsel %vm76, 1, 0
    %v93 = vcvt.s32.f32 %v77
    %v94 = vcvt.s32.f32 %v78
    %v95 = vcvt.s32.f32 %v79
    %v96 = vcvt.s32.f32 %v80
    %v97 = vcvt.s32.f32 %v81
    %v98 = vcvt.s32.f32 %v82
    %v99 = vcvt.s32.f32 %v83
    %v100 = vcvt.s32.f32 %v84
    %v101 = vcvt.s32.f32 %v85
    %v102 = vcvt.s32.f32 %v86
    %v103 = vcvt.s32.f32 %v87
    %v104 = vcvt.s32.f32 %v88
    %v105 = vcvt.s32.f32 %v89
    %v106 = vcvt.s32.f32 %v90
    %v107 = vcvt.s32.f32 %v91
    %v108 = vcvt.s32.f32 %v92
    %v109 = vsel %vm24, 1, 0
    %v110 = vcvt.s32.f32 %v109
    %v111 = vpack.c.bf16 %v110, %v110
    %v112 = vpack.c.bf16 %v94, %v93
    %v113 = vpack.c.bf16 %v96, %v95
    %v114 = vpack.c.bf16 %v98, %v97
    %v115 = vpack.c.bf16 %v100, %v99
    %v116 = vpack.c.bf16 %v102, %v101
    %v117 = vpack.c.bf16 %v104, %v103
    %v118 = vpack.c.bf16 %v106, %v105
    %v119 = vpack.c.bf16 %v108, %v107
    %120 = vmatprep.subr.bf16.mxu0 0
    %121 = vmatpush1.bf16.msra.mxu0 %v119
    %122 = vmatprep.subr.bf16.mxu0 0
    %123 = vmatpush1.bf16.msra.mxu0 %v118
    %124 = vmatprep.subr.bf16.mxu0 0
    %125 = vmatpush1.bf16.msra.mxu0 %v117
    %126 = vmatprep.subr.bf16.mxu0 0
    %127 = vmatpush1.bf16.msra.mxu0 %v116
    %128 = vmatprep.subr.bf16.mxu0 0
    %129 = vmatpush1.bf16.msra.mxu0 %v115
    %130 = vmatprep.subr.bf16.mxu0 0
    %131 = vmatpush1.bf16.msra.mxu0 %v114
    %132 = vmatprep.subr.bf16.mxu0 0
    %133 = vmatpush1.bf16.msra.mxu0 %v113
    %134 = vmatprep.subr.bf16.mxu0 0
    %135 = vmatpush1.bf16.msra.mxu0 %v112
    %136 = vmatprep.subr.bf16.mxu0 0
    %137 = vmatpush2.bf16.msra.mxu0 0
    %138 = vmatprep.subr.bf16.mxu0 0
    %139 = vmatpush2.bf16.msra.mxu0 0
    %140 = vmatprep.subr.bf16.mxu0 0
    %141 = vmatpush2.bf16.msra.mxu0 0
    %142 = vmatprep.subr.bf16.mxu0 0
    %143 = vmatpush2.bf16.msra.mxu0 0
    %144 = vmatprep.subr.bf16.mxu0 0
    %145 = vmatpush2.bf16.msra.mxu0 0
    %146 = vmatprep.subr.bf16.mxu0 0
    %147 = vmatpush2.bf16.msra.mxu0 0
    %148 = vmatprep.subr.bf16.mxu0 0
    %149 = vmatpush2.bf16.msra.mxu0 0
    %150 = vmatprep.subr.bf16.mxu0 0
    %151 = vmatpush2.bf16.msra.mxu0 0
    %152 = vmatprep.mubr.bf16.mxu0 0
    %153 = vmatmul.mubr.bf16.gmra.mxu0 %v111
    %v154 = vpop.f32.mrf.mxu0
    %v155 = vadd.f32 0.0, %v154
    %v156 = vpop.f32.mrf.mxu0
    %v157 = vpop.f32.mrf.mxu0
    %v158 = vpop.f32.mrf.mxu0
    %159 = vdwg.mxu0
    %160 = vmin.xlane.f32.xlu0 %v155
    %v161 = vpop.xlane.xlu0 %160
    %v162 = vrot.slane %v161, 4
    %v163 = vmin.f32 %v161, %v162
    %v164 = vrot.slane %v163, 2
    %v165 = vmin.f32 %v163, %v164
    %v166 = vrot.slane %v165, 1
    %v167 = vmin.f32 %v165, %v166
    %s168 = vtos %v167
    %p169 = scmp.gt.f32.partialorder %s168, 0.0
    // Predicated region
    $region10: #{tpu_custom_call.1} parent=1 // pred_check
      %p170 = pneg %p169
    $region11: #{tpu_custom_call.1} parent=1 // pred_check_branch
      %172 = sbr.rel (%p170) target = $region13
    $region12: #{tpu_custom_call.1} parent=1 // pred_region
      %v173 = vmul.f32 %v22, %v22
      %174 = vmatprep.subr.mxu0 0.0
      %v175 = vand.u32 %v108, 4294901760
      %176 = vmatpush1.msra.mxu0 %v175
      %177 = vmatprep.subr.mxu0 0.0
      %v178 = vand.u32 %v107, 4294901760
      %179 = vmatpush1.msra.mxu0 %v178
      %180 = vmatprep.subr.mxu0 0.0
      %v181 = vand.u32 %v106, 4294901760
      %182 = vmatpush1.msra.mxu0 %v181
      %183 = vmatprep.subr.mxu0 0.0
      %v184 = vand.u32 %v105, 4294901760
      %185 = vmatpush1.msra.mxu0 %v184
      %186 = vmatprep.subr.mxu0 0.0
      %v187 = vand.u32 %v104, 4294901760
      %188 = vmatpush1.msra.mxu0 %v187
      %189 = vmatprep.subr.mxu0 0.0
      %v190 = vand.u32 %v103, 4294901760
      %191 = vmatpush1.msra.mxu0 %v190
      %192 = vmatprep.subr.mxu0 0.0
      %v193 = vand.u32 %v102, 4294901760
      %194 = vmatpush1.msra.mxu0 %v193
      %195 = vmatprep.subr.mxu0 0.0
      %v196 = vand.u32 %v101, 4294901760
      %197 = vmatpush1.msra.mxu0 %v196
      %198 = vmatprep.subr.mxu0 0.0
      %v199 = vand.u32 %v100, 4294901760
      %200 = vmatpush1.msra.mxu0 %v199
      %201 = vmatprep.subr.mxu0 0.0
      %v202 = vand.u32 %v99, 4294901760
      %203 = vmatpush1.msra.mxu0 %v202
      %204 = vmatprep.subr.mxu0 0.0
      %v205 = vand.u32 %v98, 4294901760
      %206 = vmatpush1.msra.mxu0 %v205
      %207 = vmatprep.subr.mxu0 0.0
      %v208 = vand.u32 %v97, 4294901760
      %209 = vmatpush1.msra.mxu0 %v208
      %210 = vmatprep.subr.mxu0 0.0
      %v211 = vand.u32 %v96, 4294901760
      %212 = vmatpush1.msra.mxu0 %v211
      %213 = vmatprep.subr.mxu0 0.0
      %v214 = vand.u32 %v95, 4294901760
      %215 = vmatpush1.msra.mxu0 %v214
      %216 = vmatprep.subr.mxu0 0.0
      %v217 = vand.u32 %v94, 4294901760
      %218 = vmatpush1.msra.mxu0 %v217
      %219 = vmatprep.subr.mxu0 0.0
      %v220 = vand.u32 %v93, 4294901760
      %221 = vmatpush1.msra.mxu0 %v220
      %222 = vmatprep.subr.mxu0 0.0
      %223 = vmatpush2.msra.mxu0 0.0
      %224 = vmatprep.subr.mxu0 0.0
      %225 = vmatpush2.msra.mxu0 0.0
      %226 = vmatprep.subr.mxu0 0.0
      %227 = vmatpush2.msra.mxu0 0.0
      %228 = vmatprep.subr.mxu0 0.0
      %229 = vmatpush2.msra.mxu0 0.0
      %230 = vmatprep.subr.mxu0 0.0
      %231 = vmatpush2.msra.mxu0 0.0
      %232 = vmatprep.subr.mxu0 0.0
      %233 = vmatpush2.msra.mxu0 0.0
      %234 = vmatprep.subr.mxu0 0.0
      %235 = vmatpush2.msra.mxu0 0.0
      %236 = vmatprep.subr.mxu0 0.0
      %237 = vmatpush2.msra.mxu0 0.0
      %238 = vmatprep.subr.mxu0 0.0
      %239 = vmatpush2.msra.mxu0 0.0
      %240 = vmatprep.subr.mxu0 0.0
      %241 = vmatpush2.msra.mxu0 0.0
      %242 = vmatprep.subr.mxu0 0.0
      %243 = vmatpush2.msra.mxu0 0.0
      %244 = vmatprep.subr.mxu0 0.0
      %245 = vmatpush2.msra.mxu0 0.0
      %246 = vmatprep.subr.mxu0 0.0
      %247 = vmatpush2.msra.mxu0 0.0
      %248 = vmatprep.subr.mxu0 0.0
      %249 = vmatpush2.msra.mxu0 0.0
      %250 = vmatprep.subr.mxu0 0.0
      %251 = vmatpush2.msra.mxu0 0.0
      %252 = vmatprep.subr.mxu0 0.0
      %253 = vmatpush2.msra.mxu0 0.0
      %254 = vmatprep.mubr.f32.mxu0 0.0
      %v255 = vand.u32 %v173, 4294901760
      %v256 = vsub.f32 %v173, %v255
      %v257 = vand.u32 %v256, 4294901760
      %v258 = vsub.f32 %v256, %v257
      %v259 = vand.u32 %v258, 4294901760
      %260 = vmatmul.mubr.f32.gmra.mxu0 %v259
      %v261 = vpop.f32.mrf.mxu0
      %v262 = vadd.f32 0.0, %v261
      %v263 = vpop.f32.mrf.mxu0
      %264 = vdwg.mxu0
      %265 = vmatprep.subr.mxu0 0.0
      %v266 = vand.u32 %v108, 4294901760
      %v267 = vsub.f32 %v108, %v266
      %v268 = vand.u32 %v267, 4294901760
      %v269 = vsub.f32 %v267, %v268
      %v270 = vand.u32 %v269, 4294901760
      %271 = vmatpush1.msra.mxu0 %v270
      %272 = vmatprep.subr.mxu0 0.0
      %v273 = vand.u32 %v107, 4294901760
      %v274 = vsub.f32 %v107, %v273
      %v275 = vand.u32 %v274, 4294901760
      %v276 = vsub.f32 %v274, %v275
      %v277 = vand.u32 %v276, 4294901760
      %278 = vmatpush1.msra.mxu0 %v277
      %279 = vmatprep.subr.mxu0 0.0
      %v280 = vand.u32 %v106, 4294901760
      %v281 = vsub.f32 %v106, %v280
      %v282 = vand.u32 %v281, 4294901760
      %v283 = vsub.f32 %v281, %v282
      %v284 = vand.u32 %v283, 4294901760
      %285 = vmatpush1.msra.mxu0 %v284
      %286 = vmatprep.subr.mxu0 0.0
      %v287 = vand.u32 %v105, 4294901760
      %v288 = vsub.f32 %v105, %v287
      %v289 = vand.u32 %v288, 4294901760
      %v290 = vsub.f32 %v288, %v289
      %v291 = vand.u32 %v290, 4294901760
      %292 = vmatpush1.msra.mxu0 %v291
      %293 = vmatprep.subr.mxu0 0.0
      %v294 = vand.u32 %v104, 4294901760
      %v295 = vsub.f32 %v104, %v294
      %v296 = vand.u32 %v295, 4294901760
      %v297 = vsub.f32 %v295, %v296
      %v298 = vand.u32 %v297, 4294901760
      %299 = vmatpush1.msra.mxu0 %v298
      %300 = vmatprep.subr.mxu0 0.0
      %v301 = vand.u32 %v103, 4294901760
      %v302 = vsub.f32 %v103, %v301
      %v303 = vand.u32 %v302, 4294901760
      %v304 = vsub.f32 %v302, %v303
      %v305 = vand.u32 %v304, 4294901760
      %306 = vmatpush1.msra.mxu0 %v305
      %307 = vmatprep.subr.mxu0 0.0
      %v308 = vand.u32 %v102, 4294901760
      %v309 = vsub.f32 %v102, %v308
      %v310 = vand.u32 %v309, 4294901760
      %v311 = vsub.f32 %v309, %v310
      %v312 = vand.u32 %v311, 4294901760
      %313 = vmatpush1.msra.mxu0 %v312
      %314 = vmatprep.subr.mxu0 0.0
      %v315 = vand.u32 %v101, 4294901760
      %v316 = vsub.f32 %v101, %v315
      %v317 = vand.u32 %v316, 4294901760
      %v318 = vsub.f32 %v316, %v317
      %v319 = vand.u32 %v318, 4294901760
      %320 = vmatpush1.msra.mxu0 %v319
      %321 = vmatprep.subr.mxu0 0.0
      %v322 = vand.u32 %v100, 4294901760
      %v323 = vsub.f32 %v100, %v322
      %v324 = vand.u32 %v323, 4294901760
      %v325 = vsub.f32 %v323, %v324
      %v326 = vand.u32 %v325, 4294901760
      %327 = vmatpush1.msra.mxu0 %v326
      %328 = vmatprep.subr.mxu0 0.0
      %v329 = vand.u32 %v99, 4294901760
      %v330 = vsub.f32 %v99, %v329
      %v331 = vand.u32 %v330, 4294901760
      %v332 = vsub.f32 %v330, %v331
      %v333 = vand.u32 %v332, 4294901760
      %334 = vmatpush1.msra.mxu0 %v333
      %335 = vmatprep.subr.mxu0 0.0
      %v336 = vand.u32 %v98, 4294901760
      %v337 = vsub.f32 %v98, %v336
      %v338 = vand.u32 %v337, 4294901760
      %v339 = vsub.f32 %v337, %v338
      %v340 = vand.u32 %v339, 4294901760
      %341 = vmatpush1.msra.mxu0 %v340
      %342 = vmatprep.subr.mxu0 0.0
      %v343 = vand.u32 %v97, 4294901760
      %v344 = vsub.f32 %v97, %v343
      %v345 = vand.u32 %v344, 4294901760
      %v346 = vsub.f32 %v344, %v345
      %v347 = vand.u32 %v346, 4294901760
      %348 = vmatpush1.msra.mxu0 %v347
      %349 = vmatprep.subr.mxu0 0.0
      %v350 = vand.u32 %v96, 4294901760
      %v351 = vsub.f32 %v96, %v350
      %v352 = vand.u32 %v351, 4294901760
      %v353 = vsub.f32 %v351, %v352
      %v354 = vand.u32 %v353, 4294901760
      %355 = vmatpush1.msra.mxu0 %v354
      %356 = vmatprep.subr.mxu0 0.0
      %v357 = vand.u32 %v95, 4294901760
      %v358 = vsub.f32 %v95, %v357
      %v359 = vand.u32 %v358, 4294901760
      %v360 = vsub.f32 %v358, %v359
      %v361 = vand.u32 %v360, 4294901760
      %362 = vmatpush1.msra.mxu0 %v361
      %363 = vmatprep.subr.mxu0 0.0
      %v364 = vand.u32 %v94, 4294901760
      %v365 = vsub.f32 %v94, %v364
      %v366 = vand.u32 %v365, 4294901760
      %v367 = vsub.f32 %v365, %v366
      %v368 = vand.u32 %v367, 4294901760
      %369 = vmatpush1.msra.mxu0 %v368
      %370 = vmatprep.subr.mxu0 0.0
      %v371 = vand.u32 %v93, 4294901760
      %v372 = vsub.f32 %v93, %v371
      %v373 = vand.u32 %v372, 4294901760
      %v374 = vsub.f32 %v372, %v373
      %v375 = vand.u32 %v374, 4294901760
      %376 = vmatpush1.msra.mxu0 %v375
      %377 = vmatprep.subr.mxu0 0.0
      %378 = vmatpush2.msra.mxu0 0.0
      %379 = vmatprep.subr.mxu0 0.0
      %380 = vmatpush2.msra.mxu0 0.0
      %381 = vmatprep.subr.mxu0 0.0
      %382 = vmatpush2.msra.mxu0 0.0
      %383 = vmatprep.subr.mxu0 0.0
      %384 = vmatpush2.msra.mxu0 0.0
      %385 = vmatprep.subr.mxu0 0.0
      %386 = vmatpush2.msra.mxu0 0.0
      %387 = vmatprep.subr.mxu0 0.0
      %388 = vmatpush2.msra.mxu0 0.0
      %389 = vmatprep.subr.mxu0 0.0
      %390 = vmatpush2.msra.mxu0 0.0
      %391 = vmatprep.subr.mxu0 0.0
      %392 = vmatpush2.msra.mxu0 0.0
      %393 = vmatprep.subr.mxu0 0.0
      %394 = vmatpush2.msra.mxu0 0.0
      %395 = vmatprep.subr.mxu0 0.0
      %396 = vmatpush2.msra.mxu0 0.0
      %397 = vmatprep.subr.mxu0 0.0
      %398 = vmatpush2.msra.mxu0 0.0
      %399 = vmatprep.subr.mxu0 0.0
      %400 = vmatpush2.msra.mxu0 0.0
      %401 = vmatprep.subr.mxu0 0.0
      %402 = vmatpush2.msra.mxu0 0.0
      %403 = vmatprep.subr.mxu0 0.0
      %404 = vmatpush2.msra.mxu0 0.0
      %405 = vmatprep.subr.mxu0 0.0
      %406 = vmatpush2.msra.mxu0 0.0
      %407 = vmatprep.subr.mxu0 0.0
      %408 = vmatpush2.msra.mxu0 0.0
      %409 = vmatprep.mubr.f32.mxu0 0.0
      %v410 = vand.u32 %v173, 4294901760
      %411 = vmatmul.mubr.f32.gmra.mxu0 %v410
      %v412 = vpop.f32.mrf.mxu0
      %v413 = vadd.f32 %v262, %v412
      %v414 = vpop.f32.mrf.mxu0
      %415 = vdwg.mxu0
      %416 = vmatprep.subr.mxu0 0.0
      %v417 = vand.u32 %v108, 4294901760
      %v418 = vsub.f32 %v108, %v417
      %419 = vmatpush1.msra.mxu0 %v418
      %420 = vmatprep.subr.mxu0 0.0
      %v421 = vand.u32 %v107, 4294901760
      %v422 = vsub.f32 %v107, %v421
      %423 = vmatpush1.msra.mxu0 %v422
      %424 = vmatprep.subr.mxu0 0.0
      %v425 = vand.u32 %v106, 4294901760
      %v426 = vsub.f32 %v106, %v425
      %427 = vmatpush1.msra.mxu0 %v426
      %428 = vmatprep.subr.mxu0 0.0
      %v429 = vand.u32 %v105, 4294901760
      %v430 = vsub.f32 %v105, %v429
      %431 = vmatpush1.msra.mxu0 %v430
      %432 = vmatprep.subr.mxu0 0.0
      %v433 = vand.u32 %v104, 4294901760
      %v434 = vsub.f32 %v104, %v433
      %435 = vmatpush1.msra.mxu0 %v434
      %436 = vmatprep.subr.mxu0 0.0
      %v437 = vand.u32 %v103, 4294901760
      %v438 = vsub.f32 %v103, %v437
      %439 = vmatpush1.msra.mxu0 %v438
      %440 = vmatprep.subr.mxu0 0.0
      %v441 = vand.u32 %v102, 4294901760
      %v442 = vsub.f32 %v102, %v441
      %443 = vmatpush1.msra.mxu0 %v442
      %444 = vmatprep.subr.mxu0 0.0
      %v445 = vand.u32 %v101, 4294901760
      %v446 = vsub.f32 %v101, %v445
      %447 = vmatpush1.msra.mxu0 %v446
      %448 = vmatprep.subr.mxu0 0.0
      %v449 = vand.u32 %v100, 4294901760
      %v450 = vsub.f32 %v100, %v449
      %451 = vmatpush1.msra.mxu0 %v450
      %452 = vmatprep.subr.mxu0 0.0
      %v453 = vand.u32 %v99, 4294901760
      %v454 = vsub.f32 %v99, %v453
      %455 = vmatpush1.msra.mxu0 %v454
      %456 = vmatprep.subr.mxu0 0.0
      %v457 = vand.u32 %v98, 4294901760
      %v458 = vsub.f32 %v98, %v457
      %459 = vmatpush1.msra.mxu0 %v458
      %460 = vmatprep.subr.mxu0 0.0
      %v461 = vand.u32 %v97, 4294901760
      %v462 = vsub.f32 %v97, %v461
      %463 = vmatpush1.msra.mxu0 %v462
      %464 = vmatprep.subr.mxu0 0.0
      %v465 = vand.u32 %v96, 4294901760
      %v466 = vsub.f32 %v96, %v465
      %467 = vmatpush1.msra.mxu0 %v466
      %468 = vmatprep.subr.mxu0 0.0
      %v469 = vand.u32 %v95, 4294901760
      %v470 = vsub.f32 %v95, %v469
      %471 = vmatpush1.msra.mxu0 %v470
      %472 = vmatprep.subr.mxu0 0.0
      %v473 = vand.u32 %v94, 4294901760
      %v474 = vsub.f32 %v94, %v473
      %475 = vmatpush1.msra.mxu0 %v474
      %476 = vmatprep.subr.mxu0 0.0
      %v477 = vand.u32 %v93, 4294901760
      %v478 = vsub.f32 %v93, %v477
      %479 = vmatpush1.msra.mxu0 %v478
      %480 = vmatprep.subr.mxu0 0.0
      %481 = vmatpush2.msra.mxu0 0.0
      %482 = vmatprep.subr.mxu0 0.0
      %483 = vmatpush2.msra.mxu0 0.0
      %484 = vmatprep.subr.mxu0 0.0
      %485 = vmatpush2.msra.mxu0 0.0
      %486 = vmatprep.subr.mxu0 0.0
      %487 = vmatpush2.msra.mxu0 0.0
      %488 = vmatprep.subr.mxu0 0.0
      %489 = vmatpush2.msra.mxu0 0.0
      %490 = vmatprep.subr.mxu0 0.0
      %491 = vmatpush2.msra.mxu0 0.0
      %492 = vmatprep.subr.mxu0 0.0
      %493 = vmatpush2.msra.mxu0 0.0
      %494 = vmatprep.subr.mxu0 0.0
      %495 = vmatpush2.msra.mxu0 0.0
      %496 = vmatprep.subr.mxu0 0.0
      %497 = vmatpush2.msra.mxu0 0.0
      %498 = vmatprep.subr.mxu0 0.0
      %499 = vmatpush2.msra.mxu0 0.0
      %500 = vmatprep.subr.mxu0 0.0
      %501 = vmatpush2.msra.mxu0 0.0
      %502 = vmatprep.subr.mxu0 0.0
      %503 = vmatpush2.msra.mxu0 0.0
      %504 = vmatprep.subr.mxu0 0.0
      %505 = vmatpush2.msra.mxu0 0.0
      %506 = vmatprep.subr.mxu0 0.0
      %507 = vmatpush2.msra.mxu0 0.0
      %508 = vmatprep.subr.mxu0 0.0
      %509 = vmatpush2.msra.mxu0 0.0
      %510 = vmatprep.subr.mxu0 0.0
      %511 = vmatpush2.msra.mxu0 0.0
      %512 = vmatprep.mubr.f32.mxu0 0.0
      %v513 = vand.u32 %v173, 4294901760
      %v514 = vsub.f32 %v173, %v513
      %515 = vmatmul.mubr.f32.gmra.mxu0 %v514
      %v516 = vpop.f32.mrf.mxu0
      %v517 = vadd.f32 %v413, %v516
      %v518 = vpop.f32.mrf.mxu0
      %519 = vdwg.mxu0
      %520 = vmatprep.subr.mxu0 0.0
      %v521 = vand.u32 %v108, 4294901760
      %522 = vmatpush1.msra.mxu0 %v521
      %523 = vmatprep.subr.mxu0 0.0
      %v524 = vand.u32 %v107, 4294901760
      %525 = vmatpush1.msra.mxu0 %v524
      %526 = vmatprep.subr.mxu0 0.0
      %v527 = vand.u32 %v106, 4294901760
      %528 = vmatpush1.msra.mxu0 %v527
      %529 = vmatprep.subr.mxu0 0.0
      %v530 = vand.u32 %v105, 4294901760
      %531 = vmatpush1.msra.mxu0 %v530
      %532 = vmatprep.subr.mxu0 0.0
      %v533 = vand.u32 %v104, 4294901760
      %534 = vmatpush1.msra.mxu0 %v533
      %535 = vmatprep.subr.mxu0 0.0
      %v536 = vand.u32 %v103, 4294901760
      %537 = vmatpush1.msra.mxu0 %v536
      %538 = vmatprep.subr.mxu0 0.0
      %v539 = vand.u32 %v102, 4294901760
      %540 = vmatpush1.msra.mxu0 %v539
      %541 = vmatprep.subr.mxu0 0.0
      %v542 = vand.u32 %v101, 4294901760
      %543 = vmatpush1.msra.mxu0 %v542
      %544 = vmatprep.subr.mxu0 0.0
      %v545 = vand.u32 %v100, 4294901760
      %546 = vmatpush1.msra.mxu0 %v545
      %547 = vmatprep.subr.mxu0 0.0
      %v548 = vand.u32 %v99, 4294901760
      %549 = vmatpush1.msra.mxu0 %v548
      %550 = vmatprep.subr.mxu0 0.0
      %v551 = vand.u32 %v98, 4294901760
      %552 = vmatpush1.msra.mxu0 %v551
      %553 = vmatprep.subr.mxu0 0.0
      %v554 = vand.u32 %v97, 4294901760
      %555 = vmatpush1.msra.mxu0 %v554
      %556 = vmatprep.subr.mxu0 0.0
      %v557 = vand.u32 %v96, 4294901760
      %558 = vmatpush1.msra.mxu0 %v557
      %559 = vmatprep.subr.mxu0 0.0
      %v560 = vand.u32 %v95, 4294901760
      %561 = vmatpush1.msra.mxu0 %v560
      %562 = vmatprep.subr.mxu0 0.0
      %v563 = vand.u32 %v94, 4294901760
      %564 = vmatpush1.msra.mxu0 %v563
      %565 = vmatprep.subr.mxu0 0.0
      %v566 = vand.u32 %v93, 4294901760
      %567 = vmatpush1.msra.mxu0 %v566
      %568 = vmatprep.subr.mxu0 0.0
      %569 = vmatpush2.msra.mxu0 0.0
      %570 = vmatprep.subr.mxu0 0.0
      %571 = vmatpush2.msra.mxu0 0.0
      %572 = vmatprep.subr.mxu0 0.0
      %573 = vmatpush2.msra.mxu0 0.0
      %574 = vmatprep.subr.mxu0 0.0
      %575 = vmatpush2.msra.mxu0 0.0
      %576 = vmatprep.subr.mxu0 0.0
      %577 = vmatpush2.msra.mxu0 0.0
      %578 = vmatprep.subr.mxu0 0.0
      %579 = vmatpush2.msra.mxu0 0.0
      %580 = vmatprep.subr.mxu0 0.0
      %581 = vmatpush2.msra.mxu0 0.0
      %582 = vmatprep.subr.mxu0 0.0
      %583 = vmatpush2.msra.mxu0 0.0
      %584 = vmatprep.subr.mxu0 0.0
      %585 = vmatpush2.msra.mxu0 0.0
      %586 = vmatprep.subr.mxu0 0.0
      %587 = vmatpush2.msra.mxu0 0.0
      %588 = vmatprep.subr.mxu0 0.0
      %589 = vmatpush2.msra.mxu0 0.0
      %590 = vmatprep.subr.mxu0 0.0
      %591 = vmatpush2.msra.mxu0 0.0
      %592 = vmatprep.subr.mxu0 0.0
      %593 = vmatpush2.msra.mxu0 0.0
      %594 = vmatprep.subr.mxu0 0.0
      %595 = vmatpush2.msra.mxu0 0.0
      %596 = vmatprep.subr.mxu0 0.0
      %597 = vmatpush2.msra.mxu0 0.0
      %598 = vmatprep.subr.mxu0 0.0
      %599 = vmatpush2.msra.mxu0 0.0
      %600 = vmatprep.mubr.f32.mxu0 0.0
      %v601 = vand.u32 %v173, 4294901760
      %v602 = vsub.f32 %v173, %v601
      %v603 = vand.u32 %v602, 4294901760
      %604 = vmatmul.mubr.f32.gmra.mxu0 %v603
      %v605 = vpop.f32.mrf.mxu0
      %v606 = vadd.f32 %v517, %v605
      %v607 = vpop.f32.mrf.mxu0
      %608 = vdwg.mxu0
      %609 = vmatprep.subr.mxu0 0.0
      %v610 = vand.u32 %v108, 4294901760
      %v611 = vsub.f32 %v108, %v610
      %v612 = vand.u32 %v611, 4294901760
      %613 = vmatpush1.msra.mxu0 %v612
      %614 = vmatprep.subr.mxu0 0.0
      %v615 = vand.u32 %v107, 4294901760
      %v616 = vsub.f32 %v107, %v615
      %v617 = vand.u32 %v616, 4294901760
      %618 = vmatpush1.msra.mxu0 %v617
      %619 = vmatprep.subr.mxu0 0.0
      %v620 = vand.u32 %v106, 4294901760
      %v621 = vsub.f32 %v106, %v620
      %v622 = vand.u32 %v621, 4294901760
      %623 = vmatpush1.msra.mxu0 %v622
      %624 = vmatprep.subr.mxu0 0.0
      %v625 = vand.u32 %v105, 4294901760
      %v626 = vsub.f32 %v105, %v625
      %v627 = vand.u32 %v626, 4294901760
      %628 = vmatpush1.msra.mxu0 %v627
      %629 = vmatprep.subr.mxu0 0.0
      %v630 = vand.u32 %v104, 4294901760
      %v631 = vsub.f32 %v104, %v630
      %v632 = vand.u32 %v631, 4294901760
      %633 = vmatpush1.msra.mxu0 %v632
      %634 = vmatprep.subr.mxu0 0.0
      %v635 = vand.u32 %v103, 4294901760
      %v636 = vsub.f32 %v103, %v635
      %v637 = vand.u32 %v636, 4294901760
      %638 = vmatpush1.msra.mxu0 %v637
      %639 = vmatprep.subr.mxu0 0.0
      %v640 = vand.u32 %v102, 4294901760
      %v641 = vsub.f32 %v102, %v640
      %v642 = vand.u32 %v641, 4294901760
      %643 = vmatpush1.msra.mxu0 %v642
      %644 = vmatprep.subr.mxu0 0.0
      %v645 = vand.u32 %v101, 4294901760
      %v646 = vsub.f32 %v101, %v645
      %v647 = vand.u32 %v646, 4294901760
      %648 = vmatpush1.msra.mxu0 %v647
      %649 = vmatprep.subr.mxu0 0.0
      %v650 = vand.u32 %v100, 4294901760
      %v651 = vsub.f32 %v100, %v650
      %v652 = vand.u32 %v651, 4294901760
      %653 = vmatpush1.msra.mxu0 %v652
      %654 = vmatprep.subr.mxu0 0.0
      %v655 = vand.u32 %v99, 4294901760
      %v656 = vsub.f32 %v99, %v655
      %v657 = vand.u32 %v656, 4294901760
      %658 = vmatpush1.msra.mxu0 %v657
      %659 = vmatprep.subr.mxu0 0.0
      %v660 = vand.u32 %v98, 4294901760
      %v661 = vsub.f32 %v98, %v660
      %v662 = vand.u32 %v661, 4294901760
      %663 = vmatpush1.msra.mxu0 %v662
      %664 = vmatprep.subr.mxu0 0.0
      %v665 = vand.u32 %v97, 4294901760
      %v666 = vsub.f32 %v97, %v665
      %v667 = vand.u32 %v666, 4294901760
      %668 = vmatpush1.msra.mxu0 %v667
      %669 = vmatprep.subr.mxu0 0.0
      %v670 = vand.u32 %v96, 4294901760
      %v671 = vsub.f32 %v96, %v670
      %v672 = vand.u32 %v671, 4294901760
      %673 = vmatpush1.msra.mxu0 %v672
      %674 = vmatprep.subr.mxu0 0.0
      %v675 = vand.u32 %v95, 4294901760
      %v676 = vsub.f32 %v95, %v675
      %v677 = vand.u32 %v676, 4294901760
      %678 = vmatpush1.msra.mxu0 %v677
      %679 = vmatprep.subr.mxu0 0.0
      %v680 = vand.u32 %v94, 4294901760
      %v681 = vsub.f32 %v94, %v680
      %v682 = vand.u32 %v681, 4294901760
      %683 = vmatpush1.msra.mxu0 %v682
      %684 = vmatprep.subr.mxu0 0.0
      %v685 = vand.u32 %v93, 4294901760
      %v686 = vsub.f32 %v93, %v685
      %v687 = vand.u32 %v686, 4294901760
      %688 = vmatpush1.msra.mxu0 %v687
      %689 = vmatprep.subr.mxu0 0.0
      %690 = vmatpush2.msra.mxu0 0.0
      %691 = vmatprep.subr.mxu0 0.0
      %692 = vmatpush2.msra.mxu0 0.0
      %693 = vmatprep.subr.mxu0 0.0
      %694 = vmatpush2.msra.mxu0 0.0
      %695 = vmatprep.subr.mxu0 0.0
      %696 = vmatpush2.msra.mxu0 0.0
      %697 = vmatprep.subr.mxu0 0.0
      %698 = vmatpush2.msra.mxu0 0.0
      %699 = vmatprep.subr.mxu0 0.0
      %700 = vmatpush2.msra.mxu0 0.0
      %701 = vmatprep.subr.mxu0 0.0
      %702 = vmatpush2.msra.mxu0 0.0
      %703 = vmatprep.subr.mxu0 0.0
      %704 = vmatpush2.msra.mxu0 0.0
      %705 = vmatprep.subr.mxu0 0.0
      %706 = vmatpush2.msra.mxu0 0.0
      %707 = vmatprep.subr.mxu0 0.0
      %708 = vmatpush2.msra.mxu0 0.0
      %709 = vmatprep.subr.mxu0 0.0
      %710 = vmatpush2.msra.mxu0 0.0
      %711 = vmatprep.subr.mxu0 0.0
      %712 = vmatpush2.msra.mxu0 0.0
      %713 = vmatprep.subr.mxu0 0.0
      %714 = vmatpush2.msra.mxu0 0.0
      %715 = vmatprep.subr.mxu0 0.0
      %716 = vmatpush2.msra.mxu0 0.0
      %717 = vmatprep.subr.mxu0 0.0
      %718 = vmatpush2.msra.mxu0 0.0
      %719 = vmatprep.subr.mxu0 0.0
      %720 = vmatpush2.msra.mxu0 0.0
      %721 = vmatprep.mubr.f32.mxu0 0.0
      %v722 = vand.u32 %v173, 4294901760
      %723 = vmatmul.mubr.f32.gmra.mxu0 %v722
      %v724 = vpop.f32.mrf.mxu0
      %v725 = vadd.f32 %v606, %v724
      %v726 = vpop.f32.mrf.mxu0
      %727 = vdwg.mxu0
      %728 = vmatprep.subr.mxu0 0.0
      %v729 = vand.u32 %v108, 4294901760
      %730 = vmatpush1.msra.mxu0 %v729
      %731 = vmatprep.subr.mxu0 0.0
      %v732 = vand.u32 %v107, 4294901760
      %733 = vmatpush1.msra.mxu0 %v732
      %734 = vmatprep.subr.mxu0 0.0
      %v735 = vand.u32 %v106, 4294901760
      %736 = vmatpush1.msra.mxu0 %v735
      %737 = vmatprep.subr.mxu0 0.0
      %v738 = vand.u32 %v105, 4294901760
      %739 = vmatpush1.msra.mxu0 %v738
      %740 = vmatprep.subr.mxu0 0.0
      %v741 = vand.u32 %v104, 4294901760
      %742 = vmatpush1.msra.mxu0 %v741
      %743 = vmatprep.subr.mxu0 0.0
      %v744 = vand.u32 %v103, 4294901760
      %745 = vmatpush1.msra.mxu0 %v744
      %746 = vmatprep.subr.mxu0 0.0
      %v747 = vand.u32 %v102, 4294901760
      %748 = vmatpush1.msra.mxu0 %v747
      %749 = vmatprep.subr.mxu0 0.0
      %v750 = vand.u32 %v101, 4294901760
      %751 = vmatpush1.msra.mxu0 %v750
      %752 = vmatprep.subr.mxu0 0.0
      %v753 = vand.u32 %v100, 4294901760
      %754 = vmatpush1.msra.mxu0 %v753
      %755 = vmatprep.subr.mxu0 0.0
      %v756 = vand.u32 %v99, 4294901760
      %757 = vmatpush1.msra.mxu0 %v756
      %758 = vmatprep.subr.mxu0 0.0
      %v759 = vand.u32 %v98, 4294901760
      %760 = vmatpush1.msra.mxu0 %v759
      %761 = vmatprep.subr.mxu0 0.0
      %v762 = vand.u32 %v97, 4294901760
      %763 = vmatpush1.msra.mxu0 %v762
      %764 = vmatprep.subr.mxu0 0.0
      %v765 = vand.u32 %v96, 4294901760
      %766 = vmatpush1.msra.mxu0 %v765
      %767 = vmatprep.subr.mxu0 0.0
      %v768 = vand.u32 %v95, 4294901760
      %769 = vmatpush1.msra.mxu0 %v768
      %770 = vmatprep.subr.mxu0 0.0
      %v771 = vand.u32 %v94, 4294901760
      %772 = vmatpush1.msra.mxu0 %v771
      %773 = vmatprep.subr.mxu0 0.0
      %v774 = vand.u32 %v93, 4294901760
      %775 = vmatpush1.msra.mxu0 %v774
      %776 = vmatprep.subr.mxu0 0.0
      %777 = vmatpush2.msra.mxu0 0.0
      %778 = vmatprep.subr.mxu0 0.0
      %779 = vmatpush2.msra.mxu0 0.0
      %780 = vmatprep.subr.mxu0 0.0
      %781 = vmatpush2.msra.mxu0 0.0
      %782 = vmatprep.subr.mxu0 0.0
      %783 = vmatpush2.msra.mxu0 0.0
      %784 = vmatprep.subr.mxu0 0.0
      %785 = vmatpush2.msra.mxu0 0.0
      %786 = vmatprep.subr.mxu0 0.0
      %787 = vmatpush2.msra.mxu0 0.0
      %788 = vmatprep.subr.mxu0 0.0
      %789 = vmatpush2.msra.mxu0 0.0
      %790 = vmatprep.subr.mxu0 0.0
      %791 = vmatpush2.msra.mxu0 0.0
      %792 = vmatprep.subr.mxu0 0.0
      %793 = vmatpush2.msra.mxu0 0.0
      %794 = vmatprep.subr.mxu0 0.0
      %795 = vmatpush2.msra.mxu0 0.0
      %796 = vmatprep.subr.mxu0 0.0
      %797 = vmatpush2.msra.mxu0 0.0
      %798 = vmatprep.subr.mxu0 0.0
      %799 = vmatpush2.msra.mxu0 0.0
      %800 = vmatprep.subr.mxu0 0.0
      %801 = vmatpush2.msra.mxu0 0.0
      %802 = vmatprep.subr.mxu0 0.0
      %803 = vmatpush2.msra.mxu0 0.0
      %804 = vmatprep.subr.mxu0 0.0
      %805 = vmatpush2.msra.mxu0 0.0
      %806 = vmatprep.subr.mxu0 0.0
      %807 = vmatpush2.msra.mxu0 0.0
      %808 = vmatprep.mubr.f32.mxu0 0.0
      %v809 = vand.u32 %v173, 4294901760
      %810 = vmatmul.mubr.f32.gmra.mxu0 %v809
      %v811 = vpop.f32.mrf.mxu0
      %v812 = vadd.f32 %v725, %v811
      %v813 = vpop.f32.mrf.mxu0
      %814 = vdwg.mxu0
      %v815 = vrsqrt.pop %v812
      %v816 = vmul.f32 %v22, %v815
      %817 = vst [vmem:[#allocation5] sm:$0xff] %v816
    $region13: #{tpu_custom_call.1} parent=1 // pred_fallthru
      _
    %p818 = pneg %p169
    // Predicated region
    $region14: #{tpu_custom_call.1} parent=1 // pred_check
      _
    $region15: #{tpu_custom_call.1} parent=1 // pred_check_branch
      %820 = sbr.rel (%p169) target = $region17
    $region16: #{tpu_custom_call.1} parent=1 // pred_region
      %v821 = vmul.u32 %v26, 128
      %v822 = vadd.s32 %v821, %v59
      %v823 = vstv %s23
      %v824 = vadd.s32 %v822, %v823
      %v825 = vshrl.u32 %v824, 16
      %v826 = vxor.u32 %v824, %v825
      %v827 = vmul.u32 %v826, 2146121005
      %v828 = vshrl.u32 %v827, 15
      %v829 = vxor.u32 %v827, %v828
      %v830 = vmul.u32 %v829, 2221713035
      %v831 = vshrl.u32 %v830, 16
      %v832 = vxor.u32 %v830, %v831
      %v833 = vshrl.u32 %v832, 8
      %v834 = vcvt.s32.f32 %v833
      %v835 = vmul.f32 %v834, 5.9604645e-08
      %v836 = vadd.f32 %v835, 0.0
      %v837 = vadd.s32 %v824, 2654435769
      %v838 = vshrl.u32 %v837, 16
      %v839 = vxor.u32 %v837, %v838
      %v840 = vmul.u32 %v839, 2146121005
      %v841 = vshrl.u32 %v840, 15
      %v842 = vxor.u32 %v840, %v841
      %v843 = vmul.u32 %v842, 2221713035
      %v844 = vshrl.u32 %v843, 16
      %v845 = vxor.u32 %v843, %v844
      %v846 = vshrl.u32 %v845, 8
      %v847 = vcvt.s32.f32 %v846
      %v848 = vmul.f32 %v847, 5.9604645e-08
      %v849 = vadd.f32 %v836, %v848
      %v850 = vadd.s32 %v824, 1013904242
      %v851 = vshrl.u32 %v850, 16
      %v852 = vxor.u32 %v850, %v851
      %v853 = vmul.u32 %v852, 2146121005
      %v854 = vshrl.u32 %v853, 15
      %v855 = vxor.u32 %v853, %v854
      %v856 = vmul.u32 %v855, 2221713035
      %v857 = vshrl.u32 %v856, 16
      %v858 = vxor.u32 %v856, %v857
      %v859 = vshrl.u32 %v858, 8
      %v860 = vcvt.s32.f32 %v859
      %v861 = vmul.f32 %v860, 5.9604645e-08
      %v862 = vadd.f32 %v849, %v861
      %v863 = vadd.s32 %v824, 3668340011
      %v864 = vshrl.u32 %v863, 16
      %v865 = vxor.u32 %v863, %v864
      %v866 = vmul.u32 %v865, 2146121005
      %v867 = vshrl.u32 %v866, 15
      %v868 = vxor.u32 %v866, %v867
      %v869 = vmul.u32 %v868, 2221713035
      %v870 = vshrl.u32 %v869, 16
      %v871 = vxor.u32 %v869, %v870
      %v872 = vshrl.u32 %v871, 8
      %v873 = vcvt.s32.f32 %v872
      %v874 = vmul.f32 %v873, 5.9604645e-08
      %v875 = vadd.f32 %v862, %v874
      %v876 = vadd.s32 %v824, 2027808484
      %v877 = vshrl.u32 %v876, 16
      %v878 = vxor.u32 %v876, %v877
      %v879 = vmul.u32 %v878, 2146121005
      %v880 = vshrl.u32 %v879, 15
      %v881 = vxor.u32 %v879, %v880
      %v882 = vmul.u32 %v881, 2221713035
      %v883 = vshrl.u32 %v882, 16
      %v884 = vxor.u32 %v882, %v883
      %v885 = vshrl.u32 %v884, 8
      %v886 = vcvt.s32.f32 %v885
      %v887 = vmul.f32 %v886, 5.9604645e-08
      %v888 = vadd.f32 %v875, %v887
      %v889 = vadd.s32 %v824, 387276957
      %v890 = vshrl.u32 %v889, 16
      %v891 = vxor.u32 %v889, %v890
      %v892 = vmul.u32 %v891, 2146121005
      %v893 = vshrl.u32 %v892, 15
      %v894 = vxor.u32 %v892, %v893
      %v895 = vmul.u32 %v894, 2221713035
      %v896 = vshrl.u32 %v895, 16
      %v897 = vxor.u32 %v895, %v896
      %v898 = vshrl.u32 %v897, 8
      %v899 = vcvt.s32.f32 %v898
      %v900 = vmul.f32 %v899, 5.9604645e-08
      %v901 = vadd.f32 %v888, %v900
      %v902 = vsub.f32 %v901, 3.0
      %v903 = vmul.f32 %v902, 1.4142135
      %vm904 = vcmp.gt.f32.partialorder %v155, 0.0
      %v905 = vsel %vm904, %v22, %v903
      %v906 = vmul.f32 %v905, %v905
      %907 = vmatprep.subr.mxu0 0.0
      %v908 = vand.u32 %v108, 4294901760
      %909 = vmatpush1.msra.mxu0 %v908
      %910 = vmatprep.subr.mxu0 0.0
      %v911 = vand.u32 %v107, 4294901760
      %912 = vmatpush1.msra.mxu0 %v911
      %913 = vmatprep.subr.mxu0 0.0
      %v914 = vand.u32 %v106, 4294901760
      %915 = vmatpush1.msra.mxu0 %v914
      %916 = vmatprep.subr.mxu0 0.0
      %v917 = vand.u32 %v105, 4294901760
      %918 = vmatpush1.msra.mxu0 %v917
      %919 = vmatprep.subr.mxu0 0.0
      %v920 = vand.u32 %v104, 4294901760
      %921 = vmatpush1.msra.mxu0 %v920
      %922 = vmatprep.subr.mxu0 0.0
      %v923 = vand.u32 %v103, 4294901760
      %924 = vmatpush1.msra.mxu0 %v923
      %925 = vmatprep.subr.mxu0 0.0
      %v926 = vand.u32 %v102, 4294901760
      %927 = vmatpush1.msra.mxu0 %v926
      %928 = vmatprep.subr.mxu0 0.0
      %v929 = vand.u32 %v101, 4294901760
      %930 = vmatpush1.msra.mxu0 %v929
      %931 = vmatprep.subr.mxu0 0.0
      %v932 = vand.u32 %v100, 4294901760
      %933 = vmatpush1.msra.mxu0 %v932
      %934 = vmatprep.subr.mxu0 0.0
      %v935 = vand.u32 %v99, 4294901760
      %936 = vmatpush1.msra.mxu0 %v935
      %937 = vmatprep.subr.mxu0 0.0
      %v938 = vand.u32 %v98, 4294901760
      %939 = vmatpush1.msra.mxu0 %v938
      %940 = vmatprep.subr.mxu0 0.0
      %v941 = vand.u32 %v97, 4294901760
      %942 = vmatpush1.msra.mxu0 %v941
      %943 = vmatprep.subr.mxu0 0.0
      %v944 = vand.u32 %v96, 4294901760
      %945 = vmatpush1.msra.mxu0 %v944
      %946 = vmatprep.subr.mxu0 0.0
      %v947 = vand.u32 %v95, 4294901760
      %948 = vmatpush1.msra.mxu0 %v947
      %949 = vmatprep.subr.mxu0 0.0
      %v950 = vand.u32 %v94, 4294901760
      %951 = vmatpush1.msra.mxu0 %v950
      %952 = vmatprep.subr.mxu0 0.0
      %v953 = vand.u32 %v93, 4294901760
      %954 = vmatpush1.msra.mxu0 %v953
      %955 = vmatprep.subr.mxu0 0.0
      %956 = vmatpush2.msra.mxu0 0.0
      %957 = vmatprep.subr.mxu0 0.0
      %958 = vmatpush2.msra.mxu0 0.0
      %959 = vmatprep.subr.mxu0 0.0
      %960 = vmatpush2.msra.mxu0 0.0
      %961 = vmatprep.subr.mxu0 0.0
      %962 = vmatpush2.msra.mxu0 0.0
      %963 = vmatprep.subr.mxu0 0.0
      %964 = vmatpush2.msra.mxu0 0.0
      %965 = vmatprep.subr.mxu0 0.0
      %966 = vmatpush2.msra.mxu0 0.0
      %967 = vmatprep.subr.mxu0 0.0
      %968 = vmatpush2.msra.mxu0 0.0
      %969 = vmatprep.subr.mxu0 0.0
      %970 = vmatpush2.msra.mxu0 0.0
      %971 = vmatprep.subr.mxu0 0.0
      %972 = vmatpush2.msra.mxu0 0.0
      %973 = vmatprep.subr.mxu0 0.0
      %974 = vmatpush2.msra.mxu0 0.0
      %975 = vmatprep.subr.mxu0 0.0
      %976 = vmatpush2.msra.mxu0 0.0
      %977 = vmatprep.subr.mxu0 0.0
      %978 = vmatpush2.msra.mxu0 0.0
      %979 = vmatprep.subr.mxu0 0.0
      %980 = vmatpush2.msra.mxu0 0.0
      %981 = vmatprep.subr.mxu0 0.0
      %982 = vmatpush2.msra.mxu0 0.0
      %983 = vmatprep.subr.mxu0 0.0
      %984 = vmatpush2.msra.mxu0 0.0
      %985 = vmatprep.subr.mxu0 0.0
      %986 = vmatpush2.msra.mxu0 0.0
      %987 = vmatprep.mubr.f32.mxu0 0.0
      %v988 = vand.u32 %v906, 4294901760
      %v989 = vsub.f32 %v906, %v988
      %v990 = vand.u32 %v989, 4294901760
      %v991 = vsub.f32 %v989, %v990
      %v992 = vand.u32 %v991, 4294901760
      %993 = vmatmul.mubr.f32.gmra.mxu0 %v992
      %v994 = vpop.f32.mrf.mxu0
      %v995 = vadd.f32 0.0, %v994
      %v996 = vpop.f32.mrf.mxu0
      %997 = vdwg.mxu0
      %998 = vmatprep.subr.mxu0 0.0
      %v999 = vand.u32 %v108, 4294901760
      %v1000 = vsub.f32 %v108, %v999
      %v1001 = vand.u32 %v1000, 4294901760
      %v1002 = vsub.f32 %v1000, %v1001
      %v1003 = vand.u32 %v1002, 4294901760
      %1004 = vmatpush1.msra.mxu0 %v1003
      %1005 = vmatprep.subr.mxu0 0.0
      %v1006 = vand.u32 %v107, 4294901760
      %v1007 = vsub.f32 %v107, %v1006
      %v1008 = vand.u32 %v1007, 4294901760
      %v1009 = vsub.f32 %v1007, %v1008
      %v1010 = vand.u32 %v1009, 4294901760
      %1011 = vmatpush1.msra.mxu0 %v1010
      %1012 = vmatprep.subr.mxu0 0.0
      %v1013 = vand.u32 %v106, 4294901760
      %v1014 = vsub.f32 %v106, %v1013
      %v1015 = vand.u32 %v1014, 4294901760
      %v1016 = vsub.f32 %v1014, %v1015
      %v1017 = vand.u32 %v1016, 4294901760
      %1018 = vmatpush1.msra.mxu0 %v1017
      %1019 = vmatprep.subr.mxu0 0.0
      %v1020 = vand.u32 %v105, 4294901760
      %v1021 = vsub.f32 %v105, %v1020
      %v1022 = vand.u32 %v1021, 4294901760
      %v1023 = vsub.f32 %v1021, %v1022
      %v1024 = vand.u32 %v1023, 4294901760
      %1025 = vmatpush1.msra.mxu0 %v1024
      %1026 = vmatprep.subr.mxu0 0.0
      %v1027 = vand.u32 %v104, 4294901760
      %v1028 = vsub.f32 %v104, %v1027
      %v1029 = vand.u32 %v1028, 4294901760
      %v1030 = vsub.f32 %v1028, %v1029
      %v1031 = vand.u32 %v1030, 4294901760
      %1032 = vmatpush1.msra.mxu0 %v1031
      %1033 = vmatprep.subr.mxu0 0.0
      %v1034 = vand.u32 %v103, 4294901760
      %v1035 = vsub.f32 %v103, %v1034
      %v1036 = vand.u32 %v1035, 4294901760
      %v1037 = vsub.f32 %v1035, %v1036
      %v1038 = vand.u32 %v1037, 4294901760
      %1039 = vmatpush1.msra.mxu0 %v1038
      %1040 = vmatprep.subr.mxu0 0.0
      %v1041 = vand.u32 %v102, 4294901760
      %v1042 = vsub.f32 %v102, %v1041
      %v1043 = vand.u32 %v1042, 4294901760
      %v1044 = vsub.f32 %v1042, %v1043
      %v1045 = vand.u32 %v1044, 4294901760
      %1046 = vmatpush1.msra.mxu0 %v1045
      %1047 = vmatprep.subr.mxu0 0.0
      %v1048 = vand.u32 %v101, 4294901760
      %v1049 = vsub.f32 %v101, %v1048
      %v1050 = vand.u32 %v1049, 4294901760
      %v1051 = vsub.f32 %v1049, %v1050
      %v1052 = vand.u32 %v1051, 4294901760
      %1053 = vmatpush1.msra.mxu0 %v1052
      %1054 = vmatprep.subr.mxu0 0.0
      %v1055 = vand.u32 %v100, 4294901760
      %v1056 = vsub.f32 %v100, %v1055
      %v1057 = vand.u32 %v1056, 4294901760
      %v1058 = vsub.f32 %v1056, %v1057
      %v1059 = vand.u32 %v1058, 4294901760
      %1060 = vmatpush1.msra.mxu0 %v1059
      %1061 = vmatprep.subr.mxu0 0.0
      %v1062 = vand.u32 %v99, 4294901760
      %v1063 = vsub.f32 %v99, %v1062
      %v1064 = vand.u32 %v1063, 4294901760
      %v1065 = vsub.f32 %v1063, %v1064
      %v1066 = vand.u32 %v1065, 4294901760
      %1067 = vmatpush1.msra.mxu0 %v1066
      %1068 = vmatprep.subr.mxu0 0.0
      %v1069 = vand.u32 %v98, 4294901760
      %v1070 = vsub.f32 %v98, %v1069
      %v1071 = vand.u32 %v1070, 4294901760
      %v1072 = vsub.f32 %v1070, %v1071
      %v1073 = vand.u32 %v1072, 4294901760
      %1074 = vmatpush1.msra.mxu0 %v1073
      %1075 = vmatprep.subr.mxu0 0.0
      %v1076 = vand.u32 %v97, 4294901760
      %v1077 = vsub.f32 %v97, %v1076
      %v1078 = vand.u32 %v1077, 4294901760
      %v1079 = vsub.f32 %v1077, %v1078
      %v1080 = vand.u32 %v1079, 4294901760
      %1081 = vmatpush1.msra.mxu0 %v1080
      %1082 = vmatprep.subr.mxu0 0.0
      %v1083 = vand.u32 %v96, 4294901760
      %v1084 = vsub.f32 %v96, %v1083
      %v1085 = vand.u32 %v1084, 4294901760
      %v1086 = vsub.f32 %v1084, %v1085
      %v1087 = vand.u32 %v1086, 4294901760
      %1088 = vmatpush1.msra.mxu0 %v1087
      %1089 = vmatprep.subr.mxu0 0.0
      %v1090 = vand.u32 %v95, 4294901760
      %v1091 = vsub.f32 %v95, %v1090
      %v1092 = vand.u32 %v1091, 4294901760
      %v1093 = vsub.f32 %v1091, %v1092
      %v1094 = vand.u32 %v1093, 4294901760
      %1095 = vmatpush1.msra.mxu0 %v1094
      %1096 = vmatprep.subr.mxu0 0.0
      %v1097 = vand.u32 %v94, 4294901760
      %v1098 = vsub.f32 %v94, %v1097
      %v1099 = vand.u32 %v1098, 4294901760
      %v1100 = vsub.f32 %v1098, %v1099
      %v1101 = vand.u32 %v1100, 4294901760
      %1102 = vmatpush1.msra.mxu0 %v1101
      %1103 = vmatprep.subr.mxu0 0.0
      %v1104 = vand.u32 %v93, 4294901760
      %v1105 = vsub.f32 %v93, %v1104
      %v1106 = vand.u32 %v1105, 4294901760
      %v1107 = vsub.f32 %v1105, %v1106
      %v1108 = vand.u32 %v1107, 4294901760
      %1109 = vmatpush1.msra.mxu0 %v1108
      %1110 = vmatprep.subr.mxu0 0.0
      %1111 = vmatpush2.msra.mxu0 0.0
      %1112 = vmatprep.subr.mxu0 0.0
      %1113 = vmatpush2.msra.mxu0 0.0
      %1114 = vmatprep.subr.mxu0 0.0
      %1115 = vmatpush2.msra.mxu0 0.0
      %1116 = vmatprep.subr.mxu0 0.0
      %1117 = vmatpush2.msra.mxu0 0.0
      %1118 = vmatprep.subr.mxu0 0.0
      %1119 = vmatpush2.msra.mxu0 0.0
      %1120 = vmatprep.subr.mxu0 0.0
      %1121 = vmatpush2.msra.mxu0 0.0
      %1122 = vmatprep.subr.mxu0 0.0
      %1123 = vmatpush2.msra.mxu0 0.0
      %1124 = vmatprep.subr.mxu0 0.0
      %1125 = vmatpush2.msra.mxu0 0.0
      %1126 = vmatprep.subr.mxu0 0.0
      %1127 = vmatpush2.msra.mxu0 0.0
      %1128 = vmatprep.subr.mxu0 0.0
      %1129 = vmatpush2.msra.mxu0 0.0
      %1130 = vmatprep.subr.mxu0 0.0
      %1131 = vmatpush2.msra.mxu0 0.0
      %1132 = vmatprep.subr.mxu0 0.0
      %1133 = vmatpush2.msra.mxu0 0.0
      %1134 = vmatprep.subr.mxu0 0.0
      %1135 = vmatpush2.msra.mxu0 0.0
      %1136 = vmatprep.subr.mxu0 0.0
      %1137 = vmatpush2.msra.mxu0 0.0
      %1138 = vmatprep.subr.mxu0 0.0
      %1139 = vmatpush2.msra.mxu0 0.0
      %1140 = vmatprep.subr.mxu0 0.0
      %1141 = vmatpush2.msra.mxu0 0.0
      %1142 = vmatprep.mubr.f32.mxu0 0.0
      %v1143 = vand.u32 %v906, 4294901760
      %1144 = vmatmul.mubr.f32.gmra.mxu0 %v1143
      %v1145 = vpop.f32.mrf.mxu0
      %v1146 = vadd.f32 %v995, %v1145
      %v1147 = vpop.f32.mrf.mxu0
      %1148 = vdwg.mxu0
      %1149 = vmatprep.subr.mxu0 0.0
      %v1150 = vand.u32 %v108, 4294901760
      %v1151 = vsub.f32 %v108, %v1150
      %1152 = vmatpush1.msra.mxu0 %v1151
      %1153 = vmatprep.subr.mxu0 0.0
      %v1154 = vand.u32 %v107, 4294901760
      %v1155 = vsub.f32 %v107, %v1154
      %1156 = vmatpush1.msra.mxu0 %v1155
      %1157 = vmatprep.subr.mxu0 0.0
      %v1158 = vand.u32 %v106, 4294901760
      %v1159 = vsub.f32 %v106, %v1158
      %1160 = vmatpush1.msra.mxu0 %v1159
      %1161 = vmatprep.subr.mxu0 0.0
      %v1162 = vand.u32 %v105, 4294901760
      %v1163 = vsub.f32 %v105, %v1162
      %1164 = vmatpush1.msra.mxu0 %v1163
      %1165 = vmatprep.subr.mxu0 0.0
      %v1166 = vand.u32 %v104, 4294901760
      %v1167 = vsub.f32 %v104, %v1166
      %1168 = vmatpush1.msra.mxu0 %v1167
      %1169 = vmatprep.subr.mxu0 0.0
      %v1170 = vand.u32 %v103, 4294901760
      %v1171 = vsub.f32 %v103, %v1170
      %1172 = vmatpush1.msra.mxu0 %v1171
      %1173 = vmatprep.subr.mxu0 0.0
      %v1174 = vand.u32 %v102, 4294901760
      %v1175 = vsub.f32 %v102, %v1174
      %1176 = vmatpush1.msra.mxu0 %v1175
      %1177 = vmatprep.subr.mxu0 0.0
      %v1178 = vand.u32 %v101, 4294901760
      %v1179 = vsub.f32 %v101, %v1178
      %1180 = vmatpush1.msra.mxu0 %v1179
      %1181 = vmatprep.subr.mxu0 0.0
      %v1182 = vand.u32 %v100, 4294901760
      %v1183 = vsub.f32 %v100, %v1182
      %1184 = vmatpush1.msra.mxu0 %v1183
      %1185 = vmatprep.subr.mxu0 0.0
      %v1186 = vand.u32 %v99, 4294901760
      %v1187 = vsub.f32 %v99, %v1186
      %1188 = vmatpush1.msra.mxu0 %v1187
      %1189 = vmatprep.subr.mxu0 0.0
      %v1190 = vand.u32 %v98, 4294901760
      %v1191 = vsub.f32 %v98, %v1190
      %1192 = vmatpush1.msra.mxu0 %v1191
      %1193 = vmatprep.subr.mxu0 0.0
      %v1194 = vand.u32 %v97, 4294901760
      %v1195 = vsub.f32 %v97, %v1194
      %1196 = vmatpush1.msra.mxu0 %v1195
      %1197 = vmatprep.subr.mxu0 0.0
      %v1198 = vand.u32 %v96, 4294901760
      %v1199 = vsub.f32 %v96, %v1198
      %1200 = vmatpush1.msra.mxu0 %v1199
      %1201 = vmatprep.subr.mxu0 0.0
      %v1202 = vand.u32 %v95, 4294901760
      %v1203 = vsub.f32 %v95, %v1202
      %1204 = vmatpush1.msra.mxu0 %v1203
      %1205 = vmatprep.subr.mxu0 0.0
      %v1206 = vand.u32 %v94, 4294901760
      %v1207 = vsub.f32 %v94, %v1206
      %1208 = vmatpush1.msra.mxu0 %v1207
      %1209 = vmatprep.subr.mxu0 0.0
      %v1210 = vand.u32 %v93, 4294901760
      %v1211 = vsub.f32 %v93, %v1210
      %1212 = vmatpush1.msra.mxu0 %v1211
      %1213 = vmatprep.subr.mxu0 0.0
      %1214 = vmatpush2.msra.mxu0 0.0
      %1215 = vmatprep.subr.mxu0 0.0
      %1216 = vmatpush2.msra.mxu0 0.0
      %1217 = vmatprep.subr.mxu0 0.0
      %1218 = vmatpush2.msra.mxu0 0.0
      %1219 = vmatprep.subr.mxu0 0.0
      %1220 = vmatpush2.msra.mxu0 0.0
      %1221 = vmatprep.subr.mxu0 0.0
      %1222 = vmatpush2.msra.mxu0 0.0
      %1223 = vmatprep.subr.mxu0 0.0
      %1224 = vmatpush2.msra.mxu0 0.0
      %1225 = vmatprep.subr.mxu0 0.0
      %1226 = vmatpush2.msra.mxu0 0.0
      %1227 = vmatprep.subr.mxu0 0.0
      %1228 = vmatpush2.msra.mxu0 0.0
      %1229 = vmatprep.subr.mxu0 0.0
      %1230 = vmatpush2.msra.mxu0 0.0
      %1231 = vmatprep.subr.mxu0 0.0
      %1232 = vmatpush2.msra.mxu0 0.0
      %1233 = vmatprep.subr.mxu0 0.0
      %1234 = vmatpush2.msra.mxu0 0.0
      %1235 = vmatprep.subr.mxu0 0.0
      %1236 = vmatpush2.msra.mxu0 0.0
      %1237 = vmatprep.subr.mxu0 0.0
      %1238 = vmatpush2.msra.mxu0 0.0
      %1239 = vmatprep.subr.mxu0 0.0
      %1240 = vmatpush2.msra.mxu0 0.0
      %1241 = vmatprep.subr.mxu0 0.0
      %1242 = vmatpush2.msra.mxu0 0.0
      %1243 = vmatprep.subr.mxu0 0.0
      %1244 = vmatpush2.msra.mxu0 0.0
      %1245 = vmatprep.mubr.f32.mxu0 0.0
      %v1246 = vand.u32 %v906, 4294901760
      %v1247 = vsub.f32 %v906, %v1246
      %1248 = vmatmul.mubr.f32.gmra.mxu0 %v1247
      %v1249 = vpop.f32.mrf.mxu0
      %v1250 = vadd.f32 %v1146, %v1249
      %v1251 = vpop.f32.mrf.mxu0
      %1252 = vdwg.mxu0
      %1253 = vmatprep.subr.mxu0 0.0
      %v1254 = vand.u32 %v108, 4294901760
      %1255 = vmatpush1.msra.mxu0 %v1254
      %1256 = vmatprep.subr.mxu0 0.0
      %v1257 = vand.u32 %v107, 4294901760
      %1258 = vmatpush1.msra.mxu0 %v1257
      %1259 = vmatprep.subr.mxu0 0.0
      %v1260 = vand.u32 %v106, 4294901760
      %1261 = vmatpush1.msra.mxu0 %v1260
      %1262 = vmatprep.subr.mxu0 0.0
      %v1263 = vand.u32 %v105, 4294901760
      %1264 = vmatpush1.msra.mxu0 %v1263
      %1265 = vmatprep.subr.mxu0 0.0
      %v1266 = vand.u32 %v104, 4294901760
      %1267 = vmatpush1.msra.mxu0 %v1266
      %1268 = vmatprep.subr.mxu0 0.0
      %v1269 = vand.u32 %v103, 4294901760
      %1270 = vmatpush1.msra.mxu0 %v1269
      %1271 = vmatprep.subr.mxu0 0.0
      %v1272 = vand.u32 %v102, 4294901760
      %1273 = vmatpush1.msra.mxu0 %v1272
      %1274 = vmatprep.subr.mxu0 0.0
      %v1275 = vand.u32 %v101, 4294901760
      %1276 = vmatpush1.msra.mxu0 %v1275
      %1277 = vmatprep.subr.mxu0 0.0
      %v1278 = vand.u32 %v100, 4294901760
      %1279 = vmatpush1.msra.mxu0 %v1278
      %1280 = vmatprep.subr.mxu0 0.0
      %v1281 = vand.u32 %v99, 4294901760
      %1282 = vmatpush1.msra.mxu0 %v1281
      %1283 = vmatprep.subr.mxu0 0.0
      %v1284 = vand.u32 %v98, 4294901760
      %1285 = vmatpush1.msra.mxu0 %v1284
      %1286 = vmatprep.subr.mxu0 0.0
      %v1287 = vand.u32 %v97, 4294901760
      %1288 = vmatpush1.msra.mxu0 %v1287
      %1289 = vmatprep.subr.mxu0 0.0
      %v1290 = vand.u32 %v96, 4294901760
      %1291 = vmatpush1.msra.mxu0 %v1290
      %1292 = vmatprep.subr.mxu0 0.0
      %v1293 = vand.u32 %v95, 4294901760
      %1294 = vmatpush1.msra.mxu0 %v1293
      %1295 = vmatprep.subr.mxu0 0.0
      %v1296 = vand.u32 %v94, 4294901760
      %1297 = vmatpush1.msra.mxu0 %v1296
      %1298 = vmatprep.subr.mxu0 0.0
      %v1299 = vand.u32 %v93, 4294901760
      %1300 = vmatpush1.msra.mxu0 %v1299
      %1301 = vmatprep.subr.mxu0 0.0
      %1302 = vmatpush2.msra.mxu0 0.0
      %1303 = vmatprep.subr.mxu0 0.0
      %1304 = vmatpush2.msra.mxu0 0.0
      %1305 = vmatprep.subr.mxu0 0.0
      %1306 = vmatpush2.msra.mxu0 0.0
      %1307 = vmatprep.subr.mxu0 0.0
      %1308 = vmatpush2.msra.mxu0 0.0
      %1309 = vmatprep.subr.mxu0 0.0
      %1310 = vmatpush2.msra.mxu0 0.0
      %1311 = vmatprep.subr.mxu0 0.0
      %1312 = vmatpush2.msra.mxu0 0.0
      %1313 = vmatprep.subr.mxu0 0.0
      %1314 = vmatpush2.msra.mxu0 0.0
      %1315 = vmatprep.subr.mxu0 0.0
      %1316 = vmatpush2.msra.mxu0 0.0
      %1317 = vmatprep.subr.mxu0 0.0
      %1318 = vmatpush2.msra.mxu0 0.0
      %1319 = vmatprep.subr.mxu0 0.0
      %1320 = vmatpush2.msra.mxu0 0.0
      %1321 = vmatprep.subr.mxu0 0.0
      %1322 = vmatpush2.msra.mxu0 0.0
      %1323 = vmatprep.subr.mxu0 0.0
      %1324 = vmatpush2.msra.mxu0 0.0
      %1325 = vmatprep.subr.mxu0 0.0
      %1326 = vmatpush2.msra.mxu0 0.0
      %1327 = vmatprep.subr.mxu0 0.0
      %1328 = vmatpush2.msra.mxu0 0.0
      %1329 = vmatprep.subr.mxu0 0.0
      %1330 = vmatpush2.msra.mxu0 0.0
      %1331 = vmatprep.subr.mxu0 0.0
      %1332 = vmatpush2.msra.mxu0 0.0
      %1333 = vmatprep.mubr.f32.mxu0 0.0
      %v1334 = vand.u32 %v906, 4294901760
      %v1335 = vsub.f32 %v906, %v1334
      %v1336 = vand.u32 %v1335, 4294901760
      %1337 = vmatmul.mubr.f32.gmra.mxu0 %v1336
      %v1338 = vpop.f32.mrf.mxu0
      %v1339 = vadd.f32 %v1250, %v1338
      %v1340 = vpop.f32.mrf.mxu0
      %1341 = vdwg.mxu0
      %1342 = vmatprep.subr.mxu0 0.0
      %v1343 = vand.u32 %v108, 4294901760
      %v1344 = vsub.f32 %v108, %v1343
      %v1345 = vand.u32 %v1344, 4294901760
      %1346 = vmatpush1.msra.mxu0 %v1345
      %1347 = vmatprep.subr.mxu0 0.0
      %v1348 = vand.u32 %v107, 4294901760
      %v1349 = vsub.f32 %v107, %v1348
      %v1350 = vand.u32 %v1349, 4294901760
      %1351 = vmatpush1.msra.mxu0 %v1350
      %1352 = vmatprep.subr.mxu0 0.0
      %v1353 = vand.u32 %v106, 4294901760
      %v1354 = vsub.f32 %v106, %v1353
      %v1355 = vand.u32 %v1354, 4294901760
      %1356 = vmatpush1.msra.mxu0 %v1355
      %1357 = vmatprep.subr.mxu0 0.0
      %v1358 = vand.u32 %v105, 4294901760
      %v1359 = vsub.f32 %v105, %v1358
      %v1360 = vand.u32 %v1359, 4294901760
      %1361 = vmatpush1.msra.mxu0 %v1360
      %1362 = vmatprep.subr.mxu0 0.0
      %v1363 = vand.u32 %v104, 4294901760
      %v1364 = vsub.f32 %v104, %v1363
      %v1365 = vand.u32 %v1364, 4294901760
      %1366 = vmatpush1.msra.mxu0 %v1365
      %1367 = vmatprep.subr.mxu0 0.0
      %v1368 = vand.u32 %v103, 4294901760
      %v1369 = vsub.f32 %v103, %v1368
      %v1370 = vand.u32 %v1369, 4294901760
      %1371 = vmatpush1.msra.mxu0 %v1370
      %1372 = vmatprep.subr.mxu0 0.0
      %v1373 = vand.u32 %v102, 4294901760
      %v1374 = vsub.f32 %v102, %v1373
      %v1375 = vand.u32 %v1374, 4294901760
      %1376 = vmatpush1.msra.mxu0 %v1375
      %1377 = vmatprep.subr.mxu0 0.0
      %v1378 = vand.u32 %v101, 4294901760
      %v1379 = vsub.f32 %v101, %v1378
      %v1380 = vand.u32 %v1379, 4294901760
      %1381 = vmatpush1.msra.mxu0 %v1380
      %1382 = vmatprep.subr.mxu0 0.0
      %v1383 = vand.u32 %v100, 4294901760
      %v1384 = vsub.f32 %v100, %v1383
      %v1385 = vand.u32 %v1384, 4294901760
      %1386 = vmatpush1.msra.mxu0 %v1385
      %1387 = vmatprep.subr.mxu0 0.0
      %v1388 = vand.u32 %v99, 4294901760
      %v1389 = vsub.f32 %v99, %v1388
      %v1390 = vand.u32 %v1389, 4294901760
      %1391 = vmatpush1.msra.mxu0 %v1390
      %1392 = vmatprep.subr.mxu0 0.0
      %v1393 = vand.u32 %v98, 4294901760
      %v1394 = vsub.f32 %v98, %v1393
      %v1395 = vand.u32 %v1394, 4294901760
      %1396 = vmatpush1.msra.mxu0 %v1395
      %1397 = vmatprep.subr.mxu0 0.0
      %v1398 = vand.u32 %v97, 4294901760
      %v1399 = vsub.f32 %v97, %v1398
      %v1400 = vand.u32 %v1399, 4294901760
      %1401 = vmatpush1.msra.mxu0 %v1400
      %1402 = vmatprep.subr.mxu0 0.0
      %v1403 = vand.u32 %v96, 4294901760
      %v1404 = vsub.f32 %v96, %v1403
      %v1405 = vand.u32 %v1404, 4294901760
      %1406 = vmatpush1.msra.mxu0 %v1405
      %1407 = vmatprep.subr.mxu0 0.0
      %v1408 = vand.u32 %v95, 4294901760
      %v1409 = vsub.f32 %v95, %v1408
      %v1410 = vand.u32 %v1409, 4294901760
      %1411 = vmatpush1.msra.mxu0 %v1410
      %1412 = vmatprep.subr.mxu0 0.0
      %v1413 = vand.u32 %v94, 4294901760
      %v1414 = vsub.f32 %v94, %v1413
      %v1415 = vand.u32 %v1414, 4294901760
      %1416 = vmatpush1.msra.mxu0 %v1415
      %1417 = vmatprep.subr.mxu0 0.0
      %v1418 = vand.u32 %v93, 4294901760
      %v1419 = vsub.f32 %v93, %v1418
      %v1420 = vand.u32 %v1419, 4294901760
      %1421 = vmatpush1.msra.mxu0 %v1420
      %1422 = vmatprep.subr.mxu0 0.0
      %1423 = vmatpush2.msra.mxu0 0.0
      %1424 = vmatprep.subr.mxu0 0.0
      %1425 = vmatpush2.msra.mxu0 0.0
      %1426 = vmatprep.subr.mxu0 0.0
      %1427 = vmatpush2.msra.mxu0 0.0
      %1428 = vmatprep.subr.mxu0 0.0
      %1429 = vmatpush2.msra.mxu0 0.0
      %1430 = vmatprep.subr.mxu0 0.0
      %1431 = vmatpush2.msra.mxu0 0.0
      %1432 = vmatprep.subr.mxu0 0.0
      %1433 = vmatpush2.msra.mxu0 0.0
      %1434 = vmatprep.subr.mxu0 0.0
      %1435 = vmatpush2.msra.mxu0 0.0
      %1436 = vmatprep.subr.mxu0 0.0
      %1437 = vmatpush2.msra.mxu0 0.0
      %1438 = vmatprep.subr.mxu0 0.0
      %1439 = vmatpush2.msra.mxu0 0.0
      %1440 = vmatprep.subr.mxu0 0.0
      %1441 = vmatpush2.msra.mxu0 0.0
      %1442 = vmatprep.subr.mxu0 0.0
      %1443 = vmatpush2.msra.mxu0 0.0
      %1444 = vmatprep.subr.mxu0 0.0
      %1445 = vmatpush2.msra.mxu0 0.0
      %1446 = vmatprep.subr.mxu0 0.0
      %1447 = vmatpush2.msra.mxu0 0.0
      %1448 = vmatprep.subr.mxu0 0.0
      %1449 = vmatpush2.msra.mxu0 0.0
      %1450 = vmatprep.subr.mxu0 0.0
      %1451 = vmatpush2.msra.mxu0 0.0
      %1452 = vmatprep.subr.mxu0 0.0
      %1453 = vmatpush2.msra.mxu0 0.0
      %1454 = vmatprep.mubr.f32.mxu0 0.0
      %v1455 = vand.u32 %v906, 4294901760
      %1456 = vmatmul.mubr.f32.gmra.mxu0 %v1455
      %v1457 = vpop.f32.mrf.mxu0
      %v1458 = vadd.f32 %v1339, %v1457
      %v1459 = vpop.f32.mrf.mxu0
      %1460 = vdwg.mxu0
      %1461 = vmatprep.subr.mxu0 0.0
      %v1462 = vand.u32 %v108, 4294901760
      %1463 = vmatpush1.msra.mxu0 %v1462
      %1464 = vmatprep.subr.mxu0 0.0
      %v1465 = vand.u32 %v107, 4294901760
      %1466 = vmatpush1.msra.mxu0 %v1465
      %1467 = vmatprep.subr.mxu0 0.0
      %v1468 = vand.u32 %v106, 4294901760
      %1469 = vmatpush1.msra.mxu0 %v1468
      %1470 = vmatprep.subr.mxu0 0.0
      %v1471 = vand.u32 %v105, 4294901760
      %1472 = vmatpush1.msra.mxu0 %v1471
      %1473 = vmatprep.subr.mxu0 0.0
      %v1474 = vand.u32 %v104, 4294901760
      %1475 = vmatpush1.msra.mxu0 %v1474
      %1476 = vmatprep.subr.mxu0 0.0
      %v1477 = vand.u32 %v103, 4294901760
      %1478 = vmatpush1.msra.mxu0 %v1477
      %1479 = vmatprep.subr.mxu0 0.0
      %v1480 = vand.u32 %v102, 4294901760
      %1481 = vmatpush1.msra.mxu0 %v1480
      %1482 = vmatprep.subr.mxu0 0.0
      %v1483 = vand.u32 %v101, 4294901760
      %1484 = vmatpush1.msra.mxu0 %v1483
      %1485 = vmatprep.subr.mxu0 0.0
      %v1486 = vand.u32 %v100, 4294901760
      %1487 = vmatpush1.msra.mxu0 %v1486
      %1488 = vmatprep.subr.mxu0 0.0
      %v1489 = vand.u32 %v99, 4294901760
      %1490 = vmatpush1.msra.mxu0 %v1489
      %1491 = vmatprep.subr.mxu0 0.0
      %v1492 = vand.u32 %v98, 4294901760
      %1493 = vmatpush1.msra.mxu0 %v1492
      %1494 = vmatprep.subr.mxu0 0.0
      %v1495 = vand.u32 %v97, 4294901760
      %1496 = vmatpush1.msra.mxu0 %v1495
      %1497 = vmatprep.subr.mxu0 0.0
      %v1498 = vand.u32 %v96, 4294901760
      %1499 = vmatpush1.msra.mxu0 %v1498
      %1500 = vmatprep.subr.mxu0 0.0
      %v1501 = vand.u32 %v95, 4294901760
      %1502 = vmatpush1.msra.mxu0 %v1501
      %1503 = vmatprep.subr.mxu0 0.0
      %v1504 = vand.u32 %v94, 4294901760
      %1505 = vmatpush1.msra.mxu0 %v1504
      %1506 = vmatprep.subr.mxu0 0.0
      %v1507 = vand.u32 %v93, 4294901760
      %1508 = vmatpush1.msra.mxu0 %v1507
      %1509 = vmatprep.subr.mxu0 0.0
      %1510 = vmatpush2.msra.mxu0 0.0
      %1511 = vmatprep.subr.mxu0 0.0
      %1512 = vmatpush2.msra.mxu0 0.0
      %1513 = vmatprep.subr.mxu0 0.0
      %1514 = vmatpush2.msra.mxu0 0.0
      %1515 = vmatprep.subr.mxu0 0.0
      %1516 = vmatpush2.msra.mxu0 0.0
      %1517 = vmatprep.subr.mxu0 0.0
      %1518 = vmatpush2.msra.mxu0 0.0
      %1519 = vmatprep.subr.mxu0 0.0
      %1520 = vmatpush2.msra.mxu0 0.0
      %1521 = vmatprep.subr.mxu0 0.0
      %1522 = vmatpush2.msra.mxu0 0.0
      %1523 = vmatprep.subr.mxu0 0.0
      %1524 = vmatpush2.msra.mxu0 0.0
      %1525 = vmatprep.subr.mxu0 0.0
      %1526 = vmatpush2.msra.mxu0 0.0
      %1527 = vmatprep.subr.mxu0 0.0
      %1528 = vmatpush2.msra.mxu0 0.0
      %1529 = vmatprep.subr.mxu0 0.0
      %1530 = vmatpush2.msra.mxu0 0.0
      %1531 = vmatprep.subr.mxu0 0.0
      %1532 = vmatpush2.msra.mxu0 0.0
      %1533 = vmatprep.subr.mxu0 0.0
      %1534 = vmatpush2.msra.mxu0 0.0
      %1535 = vmatprep.subr.mxu0 0.0
      %1536 = vmatpush2.msra.mxu0 0.0
      %1537 = vmatprep.subr.mxu0 0.0
      %1538 = vmatpush2.msra.mxu0 0.0
      %1539 = vmatprep.subr.mxu0 0.0
      %1540 = vmatpush2.msra.mxu0 0.0
      %1541 = vmatprep.mubr.f32.mxu0 0.0
      %v1542 = vand.u32 %v906, 4294901760
      %1543 = vmatmul.mubr.f32.gmra.mxu0 %v1542
      %v1544 = vpop.f32.mrf.mxu0
      %v1545 = vadd.f32 %v1458, %v1544
      %v1546 = vpop.f32.mrf.mxu0
      %1547 = vdwg.mxu0
      %v1548 = vrsqrt.pop %v1545
      %v1549 = vmul.f32 %v905, %v1548
      %1550 = vst [vmem:[#allocation5] sm:$0xff] %v1549
    $region17: #{tpu_custom_call.1} parent=1 // pred_fallthru
      _
    // Predicated region
    $region18: #{tpu_custom_call.1} parent=1 // pred_check
      _
    $region19: #{tpu_custom_call.1} parent=1 // pred_check_branch
      %1552 = sbr.rel (0) target = $region21
    $region20: #{tpu_custom_call.1} parent=1 // pred_region
      %s1554 = ssub.s32 128, 128
      %1555 = vsyncadd [#allocation4], %s1554
      %s1557 = sshll.u32 [#allocation5], 4
      %s1558 = int_to_ptr.vmem [resolvable:$true] %s1557
      %1560 = dma.vmem_to_hbm [thread:$0]  %s1558, 128, %s1, [#allocation4]
    $region21: #{tpu_custom_call.1} parent=1 // pred_fallthru
      _
    // Predicated region
    $region22: #{tpu_custom_call.1} parent=1 // pred_check
      _
    $region23: #{tpu_custom_call.1} parent=1 // pred_check_branch
      %1562 = sbr.rel (0) target = $region25
    $region24: #{tpu_custom_call.1} parent=1 // pred_region
      %1563 = dma.done [#allocation4], 128
    $region25: #{tpu_custom_call.1} parent=1 // pred_fallthru
      _
    %1564 = vsyncpa [#allocation3], 1
    %1565 = vsyncpa [#allocation4], 1

</llo_original>
